<compile_context>
chip_gen: v7x
topology: tpu7x:2x2x1
jax: 0.10.0
libtpu: 0.0.40
codegen_flags: <defaults>
</compile_context>

<pallas_src>
import functools

import jax
import jax.numpy as jnp
from jax import lax
from jax.experimental import pallas as pl
from jax.experimental.pallas import tpu as pltpu

_NEG_INF = -1e30


def _attention_kernel(x_ref, wq_ref, wk_ref, wv_ref, wo_ref, bo_ref, o_ref,
                      acc_ref, pv_ref, *, group_heads, dim_head, block_b,
                      seq_len, seq_valid, compute_dtype):
    # x_ref        : (block_b*seq_len, D)  lane-dense row slab, compute_dtype
    # wq/wk/wv_ref : (1, D, g*dh)          this head-group's projections (scale in Wq)
    # wo_ref       : (1, g*dh, D)          this head-group's output-proj slice
    # bo_ref       : (1, D)                output bias, f32
    # o_ref        : (block_b*seq_len, D)  resident across the head-group axis
    # acc_ref      : (rows, D) f32 scratch — output-projection accumulator
    # pv_ref       : (rows, g*dh) scratch — softmax(QK^T) @ V for this group
    j = pl.program_id(1)
    dh = dim_head

    @pl.when(j == 0)
    def _init():
        acc_ref[...] = jnp.zeros_like(acc_ref)

    x = x_ref[...]

    # Head-group Q/K/V projections: output width g*dh (128/256 for real ViT
    # configs) keeps the MXU columns filled; bf16 operands, f32 accumulate.
    q = jnp.dot(x, wq_ref[0], preferred_element_type=jnp.float32).astype(compute_dtype)
    k = jnp.dot(x, wk_ref[0], preferred_element_type=jnp.float32).astype(compute_dtype)
    v = jnp.dot(x, wv_ref[0], preferred_element_type=jnp.float32).astype(compute_dtype)

    for b in range(block_b):                       # small static unrolls only
        lo = b * seq_len
        for h in range(group_heads):
            cl = h * dh
            qb = q[lo:lo + seq_len, cl:cl + dh]
            kb = k[lo:lo + seq_len, cl:cl + dh]
            vb = v[lo:lo + seq_len, cl:cl + dh]

            # scores: contract last dims of Q and K — no materialized transpose
            dots = lax.dot_general(qb, kb, (((1,), (1,)), ((), ())),
                                   preferred_element_type=jnp.float32)
            if seq_valid < seq_len:                # mask zero-padded key columns
                col = lax.broadcasted_iota(jnp.int32, (seq_len, seq_len), 1)
                dots = jnp.where(col < seq_valid, dots, _NEG_INF)

            # numerically stable softmax, all f32; denominator on the EUP
            m = jnp.max(dots, axis=-1, keepdims=True)
            e = jnp.exp(dots - m)
            attn = e * pl.reciprocal(jnp.sum(e, axis=-1, keepdims=True),
                                     approx=True)

            pv = jnp.dot(attn.astype(compute_dtype), vb,
                         preferred_element_type=jnp.float32)
            pv_ref[lo:lo + seq_len, cl:cl + dh] = pv.astype(compute_dtype)

    # One output projection per head group: contraction depth g*dh fills the
    # MXU; accumulate into an f32 VMEM scratch held across the head-group axis.
    acc_ref[...] += jnp.dot(pv_ref[...], wo_ref[0],
                            preferred_element_type=jnp.float32)

    @pl.when(j == pl.num_programs(1) - 1)
    def _finalize():
        o_ref[...] = (acc_ref[...] + bo_ref[...]).astype(o_ref.dtype)


def _pick_block_b(batch, seq, target_rows=256):
    """Largest batch block whose row slab ~fills MXU tiles, keeping >=2 grid steps."""
    divs = [d for d in range(batch, 0, -1) if batch % d == 0]
    bb = next((d for d in divs if d * seq <= max(target_rows, seq)), 1)
    if batch // bb < 2:                      # v7x has 2 TensorCores / chip
        for d in divs:
            if d <= bb and batch // d >= 2:
                bb = d
                break
    return bb


def _pick_group_heads(heads, dim_head, target_width=256):
    """Largest divisor of `heads` whose grouped width g*dh fits an MXU column tile."""
    for g in range(heads, 0, -1):
        if heads % g == 0 and g * dim_head <= max(target_width, dim_head):
            return g
    return 1


def attention_pallas(x, w_qkv, w_out, b_out, *, heads, dim_head,
                     block_b=None, group_heads=None,
                     compute_dtype=jnp.bfloat16):
    """Fused ViT attention forward.

    x     : (B, N, D)
    w_qkv : (D, 3*heads*dim_head)  pre-transposed to_qkv weight ([in, out])
    w_out : (heads*dim_head, D)    pre-transposed to_out Linear weight ([in, out])
    b_out : (D,)                   to_out Linear bias
    """
    B, N, D = x.shape
    inner = heads * dim_head
    assert w_qkv.shape == (D, 3 * inner)
    assert w_out.shape == (inner, D)
    scale = float(dim_head) ** -0.5

    if group_heads is None:
        group_heads = _pick_group_heads(heads, dim_head)
    assert heads % group_heads == 0
    num_groups = heads // group_heads
    gdh = group_heads * dim_head
    cdt = jnp.dtype(compute_dtype)

    # Pad the sequence so (rows, D) blocks satisfy the sublane-of-8 rule with
    # grid > 1; padded key columns are masked inside the kernel.
    Np = ((N + 7) // 8) * 8
    if block_b is None:
        block_b = _pick_block_b(B, Np)
    assert B % block_b == 0
    rows = block_b * Np

    # Per-group weight layout; softmax scale folded into Wq before the cast.
    def group_cols(w):                       # (D, inner) -> (G, D, g*dh)
        return w.reshape(D, num_groups, gdh).transpose(1, 0, 2)

    w_q = group_cols(w_qkv[:, 0 * inner:1 * inner] * scale).astype(cdt)
    w_k = group_cols(w_qkv[:, 1 * inner:2 * inner]).astype(cdt)
    w_v = group_cols(w_qkv[:, 2 * inner:3 * inner]).astype(cdt)
    w_o = w_out.reshape(num_groups, gdh, D).astype(cdt)
    b_o = b_out.reshape(1, D).astype(jnp.float32)

    xp = x if Np == N else jnp.pad(x, ((0, 0), (0, Np - N), (0, 0)))
    x2 = xp.reshape(B * Np, D).astype(cdt)   # lane-dense 2-D row slab

    kernel = functools.partial(
        _attention_kernel, group_heads=group_heads, dim_head=dim_head,
        block_b=block_b, seq_len=Np, seq_valid=N, compute_dtype=cdt)

    flops = (2 * B * Np * D * 3 * inner            # QKV projections
             + 4 * B * heads * Np * Np * dim_head  # scores + attn @ V
             + 2 * B * Np * inner * D)             # output projection
    cost = pl.CostEstimate(
        flops=flops,
        transcendentals=B * heads * Np * Np,
        bytes_accessed=(B * Np * D) * (cdt.itemsize + x.dtype.itemsize)
        + (w_q.size + w_k.size + w_v.size + w_o.size) * cdt.itemsize
        + b_o.size * 4,
    )

    # Explicit VMEM budget from the actual block footprint (double-buffered
    # inputs/outputs + scratch), with headroom; clamp to the v7x 64 MiB total.
    weight_block = (3 * D * gdh + gdh * D) * cdt.itemsize
    x_block = rows * D * cdt.itemsize
    out_block = rows * D * x.dtype.itemsize
    scratch = rows * D * 4 + rows * gdh * cdt.itemsize
    vmem_need = 2 * (weight_block + x_block + out_block) + scratch + 2 * D * 4
    vmem_limit = int(min(max(2 * vmem_need, 32 * 1024 * 1024), 64 * 1024 * 1024))

    out2 = pl.pallas_call(
        kernel,
        out_shape=jax.ShapeDtypeStruct((B * Np, D), x.dtype),
        grid_spec=pltpu.PrefetchScalarGridSpec(
            num_scalar_prefetch=0,
            grid=(B // block_b, num_groups),       # reduction (head-group) axis last
            in_specs=[
                pl.BlockSpec((rows, D), lambda i, j: (i, 0)),
                pl.BlockSpec((1, D, gdh), lambda i, j: (j, 0, 0)),
                pl.BlockSpec((1, D, gdh), lambda i, j: (j, 0, 0)),
                pl.BlockSpec((1, D, gdh), lambda i, j: (j, 0, 0)),
                pl.BlockSpec((1, gdh, D), lambda i, j: (j, 0, 0)),
                pl.BlockSpec((1, D), lambda i, j: (0, 0)),
            ],
            out_specs=pl.BlockSpec((rows, D), lambda i, j: (i, 0)),
            scratch_shapes=[
                pltpu.VMEM((rows, D), jnp.float32),   # output-proj accumulator
                pltpu.VMEM((rows, gdh), cdt),         # per-group PV buffer
            ],
        ),
        compiler_params=pltpu.CompilerParams(
            dimension_semantics=("parallel", "arbitrary"),
            vmem_limit_bytes=vmem_limit),
        cost_estimate=cost,
    )(x2, w_q, w_k, w_v, w_o, b_o)

    out = out2.reshape(B, Np, D)
    if Np != N:
        out = out[:, :N, :]
    return out


def attention_ref(x, w_qkv, w_out, b_out, *, heads, dim_head):
    """Pure-JAX f32 reference matching the PyTorch forward."""
    B, N, D = x.shape
    inner = heads * dim_head
    qkv = x @ w_qkv
    q, k, v = jnp.split(qkv, 3, axis=-1)

    def to_bhnd(t):
        return t.reshape(B, N, heads, dim_head).transpose(0, 2, 1, 3)

    q, k, v = map(to_bhnd, (q, k, v))
    dots = jnp.einsum('bhid,bhjd->bhij', q, k) * (dim_head ** -0.5)
    attn = jax.nn.softmax(dots, axis=-1)
    out = jnp.einsum('bhij,bhjd->bhid', attn, v)
    out = out.transpose(0, 2, 1, 3).reshape(B, N, inner)
    return out @ w_out + b_out


def _make_params(key, dim, heads, dim_head):
    inner = heads * dim_head
    kqkv, kwo, kbo = jax.random.split(key, 3)
    lim_qkv = 1.0 / (dim ** 0.5)
    w_qkv = jax.random.uniform(kqkv, (dim, 3 * inner), jnp.float32,
                               minval=-lim_qkv, maxval=lim_qkv)
    lim_out = 1.0 / (inner ** 0.5)
    w_out = jax.random.uniform(kwo, (inner, dim), jnp.float32,
                               minval=-lim_out, maxval=lim_out)
    b_out = jax.random.uniform(kbo, (dim,), jnp.float32,
                               minval=-lim_out, maxval=lim_out)
    return w_qkv, w_out, b_out


if __name__ == "__main__":
    key = jax.random.PRNGKey(0)
    k1, k2, kp1, kp2 = jax.random.split(key, 4)

    # Test 1: small shapes consistent with the module forward (x is (b, n, dim)).
    # B=4 exercises batch-blocking (block_b=2) and a 2-step parallel grid.
    B, N, DIM, HEADS, DIM_HEAD = 4, 8, 32, 4, 8
    x = jax.random.normal(k1, (B, N, DIM), dtype=jnp.float32)
    w_qkv, w_out, b_out = _make_params(kp1, DIM, HEADS, DIM_HEAD)
    out = attention_pallas(x, w_qkv, w_out, b_out, heads=HEADS, dim_head=DIM_HEAD)
    out = jax.block_until_ready(out)
    ref = attention_ref(x, w_qkv, w_out, b_out, heads=HEADS, dim_head=DIM_HEAD)
    assert out.shape == (B, N, DIM)
    err = float(jnp.max(jnp.abs(out - ref)))
    # bf16 matmul operands + approx reciprocal => relaxed tolerance vs f32 ref.
    assert err < 5e-2, f"test1 max abs err = {err}"

    # Test 2: sequence not a multiple of 8 exercises the padding + key-mask path.
    B2, N2, DIM2, HEADS2, DIM_HEAD2 = 2, 6, 32, 2, 8
    x2 = jax.random.normal(k2, (B2, N2, DIM2), dtype=jnp.float32)
    w_qkv2, w_out2, b_out2 = _make_params(kp2, DIM2, HEADS2, DIM_HEAD2)
    out2 = attention_pallas(x2, w_qkv2, w_out2, b_out2,
                            heads=HEADS2, dim_head=DIM_HEAD2)
    out2 = jax.block_until_ready(out2)
    ref2 = attention_ref(x2, w_qkv2, w_out2, b_out2,
                         heads=HEADS2, dim_head=DIM_HEAD2)
    assert out2.shape == (B2, N2, DIM2)
    err2 = float(jnp.max(jnp.abs(out2 - ref2)))
    assert err2 < 5e-2, f"test2 max abs err = {err2}"

    print("KERNEL_OK")
</pallas_src>

<mosaic_0001>
module attributes {stable_mosaic.version = 11 : i64} {
  func.func @_attention_kernel(%arg0: i32, %arg1: i32, %arg2: memref<16x32xbf16, #tpu.memory_space<vmem>>, %arg3: memref<1x32x32xbf16, #tpu.memory_space<vmem>>, %arg4: memref<1x32x32xbf16, #tpu.memory_space<vmem>>, %arg5: memref<1x32x32xbf16, #tpu.memory_space<vmem>>, %arg6: memref<1x32x32xbf16, #tpu.memory_space<vmem>>, %arg7: memref<1x32xf32, #tpu.memory_space<vmem>>, %arg8: memref<16x32xf32, #tpu.memory_space<vmem>>, %arg9: memref<16x32xf32, #tpu.memory_space<vmem>>, %arg10: memref<16x32xbf16, #tpu.memory_space<vmem>>) attributes {dimension_semantics = [#tpu.dimension_semantics<parallel>, #tpu.dimension_semantics<arbitrary>], iteration_bounds = array<i64: 2, 1>, scalar_prefetch = 0 : i64, scratch_operands = 2 : i64, tpu.core_type = #tpu.core_type<tc>, window_params = [{transform_indices = @transform_0, window_bounds = array<i64: 16, 32>}, {transform_indices = @transform_1, window_bounds = array<i64: 1, 32, 32>}, {transform_indices = @transform_2, window_bounds = array<i64: 1, 32, 32>}, {transform_indices = @transform_3, window_bounds = array<i64: 1, 32, 32>}, {transform_indices = @transform_4, window_bounds = array<i64: 1, 32, 32>}, {pipeline_mode = #tpu.pipeline_mode<synchronous>, transform_indices = @transform_5, window_bounds = array<i64: 1, 32>}, {transform_indices = @transform_6, window_bounds = array<i64: 16, 32>}]} {
    %c0_i32 = arith.constant 0 : i32
    %0 = arith.cmpi eq, %arg1, %c0_i32 : i32
    %1 = arith.extui %0 : i1 to i32
    %c0_i32_0 = arith.constant 0 : i32
    %2 = arith.cmpi ne, %1, %c0_i32_0 : i32
    scf.if %2 {
      %cst_70 = arith.constant 0.000000e+00 : f32
      %170 = vector.broadcast %cst_70 : f32 to vector<16x32xf32>
      %c0_71 = arith.constant 0 : index
      %c0_72 = arith.constant 0 : index
      %171 = vector.load %arg9[%c0_71, %c0_72] : memref<16x32xf32, #tpu.memory_space<vmem>>, vector<16x32xf32>
      tpu.vector_store %arg9[%c0_71, %c0_72], %170 {strides = array<i32>} : memref<16x32xf32, #tpu.memory_space<vmem>>, vector<16x32xf32>,
    } else {
    }
    %c0 = arith.constant 0 : index
    %c0_1 = arith.constant 0 : index
    %3 = vector.load %arg2[%c0, %c0_1] : memref<16x32xbf16, #tpu.memory_space<vmem>>, vector<16x32xbf16>
    %c0_2 = arith.constant 0 : index
    %c0_3 = arith.constant 0 : index
    %c0_4 = arith.constant 0 : index
    %4 = vector.load %arg3[%c0_2, %c0_3, %c0_4] : memref<1x32x32xbf16, #tpu.memory_space<vmem>>, vector<1x32x32xbf16>
    %5 = vector.shape_cast %4 : vector<1x32x32xbf16> to vector<32x32xbf16>
    %cst = arith.constant dense<0.000000e+00> : vector<16x32xf32>
    %6 = tpu.matmul %3, %5, %cst {dimension_numbers = #tpu.dot_dimension_numbers<[1], [0], [0], [1], [0, 0, 1, 1], [], []>} : vector<16x32xbf16>, vector<32x32xbf16>, vector<16x32xf32> -> vector<16x32xf32>
    %7 = arith.truncf %6 : vector<16x32xf32> to vector<16x32xbf16>
    %c0_5 = arith.constant 0 : index
    %c0_6 = arith.constant 0 : index
    %c0_7 = arith.constant 0 : index
    %8 = vector.load %arg4[%c0_5, %c0_6, %c0_7] : memref<1x32x32xbf16, #tpu.memory_space<vmem>>, vector<1x32x32xbf16>
    %9 = vector.shape_cast %8 : vector<1x32x32xbf16> to vector<32x32xbf16>
    %cst_8 = arith.constant dense<0.000000e+00> : vector<16x32xf32>
    %10 = tpu.matmul %3, %9, %cst_8 {dimension_numbers = #tpu.dot_dimension_numbers<[1], [0], [0], [1], [0, 0, 1, 1], [], []>} : vector<16x32xbf16>, vector<32x32xbf16>, vector<16x32xf32> -> vector<16x32xf32>
    %11 = arith.truncf %10 : vector<16x32xf32> to vector<16x32xbf16>
    %c0_9 = arith.constant 0 : index
    %c0_10 = arith.constant 0 : index
    %c0_11 = arith.constant 0 : index
    %12 = vector.load %arg5[%c0_9, %c0_10, %c0_11] : memref<1x32x32xbf16, #tpu.memory_space<vmem>>, vector<1x32x32xbf16>
    %13 = vector.shape_cast %12 : vector<1x32x32xbf16> to vector<32x32xbf16>
    %cst_12 = arith.constant dense<0.000000e+00> : vector<16x32xf32>
    %14 = tpu.matmul %3, %13, %cst_12 {dimension_numbers = #tpu.dot_dimension_numbers<[1], [0], [0], [1], [0, 0, 1, 1], [], []>} : vector<16x32xbf16>, vector<32x32xbf16>, vector<16x32xf32> -> vector<16x32xf32>
    %15 = arith.truncf %14 : vector<16x32xf32> to vector<16x32xbf16>
    %16 = vector.extract_strided_slice %7 {offsets = [0, 0], sizes = [8, 8], strides = [1, 1]} : vector<16x32xbf16> to vector<8x8xbf16>
    %17 = vector.extract_strided_slice %11 {offsets = [0, 0], sizes = [8, 8], strides = [1, 1]} : vector<16x32xbf16> to vector<8x8xbf16>
    %18 = vector.extract_strided_slice %15 {offsets = [0, 0], sizes = [8, 8], strides = [1, 1]} : vector<16x32xbf16> to vector<8x8xbf16>
    %cst_13 = arith.constant dense<0.000000e+00> : vector<8x8xf32>
    %19 = tpu.matmul %16, %17, %cst_13 {dimension_numbers = #tpu.dot_dimension_numbers<[1], [1], [0], [0], [0, 0, 1, 0], [], []>} : vector<8x8xbf16>, vector<8x8xbf16>, vector<8x8xf32> -> vector<8x8xf32>
    %cst_14 = arith.constant dense<0xFF800000> : vector<8xf32>
    %20 = vector.multi_reduction <maximumf>, %19, %cst_14 [1] : vector<8x8xf32> to vector<8xf32>
    %21 = vector.shape_cast %20 : vector<8xf32> to vector<8x1xf32>
    %22 = vector.broadcast %21 : vector<8x1xf32> to vector<8x8xf32>
    %23 = arith.subf %19, %22 : vector<8x8xf32>
    %24 = math.exp %23 : vector<8x8xf32>
    %cst_15 = arith.constant dense<0.000000e+00> : vector<8xf32>
    %25 = vector.multi_reduction <add>, %24, %cst_15 [1] : vector<8x8xf32> to vector<8xf32>
    %26 = vector.shape_cast %25 : vector<8xf32> to vector<8x1xf32>
    %27 = tpu.reciprocal %26 {approx = true} : vector<8x1xf32> -> vector<8x1xf32>
    %28 = vector.broadcast %27 : vector<8x1xf32> to vector<8x8xf32>
    %29 = arith.mulf %24, %28 : vector<8x8xf32>
    %30 = arith.truncf %29 : vector<8x8xf32> to vector<8x8xbf16>
    %cst_16 = arith.constant dense<0.000000e+00> : vector<8x8xf32>
    %31 = tpu.matmul %30, %18, %cst_16 {dimension_numbers = #tpu.dot_dimension_numbers<[1], [0], [0], [1], [0, 0, 1, 1], [], []>} : vector<8x8xbf16>, vector<8x8xbf16>, vector<8x8xf32> -> vector<8x8xf32>
    %32 = arith.truncf %31 : vector<8x8xf32> to vector<8x8xbf16>
    %c0_17 = arith.constant 0 : index
    %c0_18 = arith.constant 0 : index
    %33 = vector.load %arg10[%c0_17, %c0_18] : memref<16x32xbf16, #tpu.memory_space<vmem>>, vector<8x8xbf16>
    tpu.vector_store %arg10[%c0_17, %c0_18], %32 {strides = array<i32>} : memref<16x32xbf16, #tpu.memory_space<vmem>>, vector<8x8xbf16>,
    %34 = vector.extract_strided_slice %7 {offsets = [0, 8], sizes = [8, 8], strides = [1, 1]} : vector<16x32xbf16> to vector<8x8xbf16>
    %35 = vector.extract_strided_slice %11 {offsets = [0, 8], sizes = [8, 8], strides = [1, 1]} : vector<16x32xbf16> to vector<8x8xbf16>
    %36 = vector.extract_strided_slice %15 {offsets = [0, 8], sizes = [8, 8], strides = [1, 1]} : vector<16x32xbf16> to vector<8x8xbf16>
    %cst_19 = arith.constant dense<0.000000e+00> : vector<8x8xf32>
    %37 = tpu.matmul %34, %35, %cst_19 {dimension_numbers = #tpu.dot_dimension_numbers<[1], [1], [0], [0], [0, 0, 1, 0], [], []>} : vector<8x8xbf16>, vector<8x8xbf16>, vector<8x8xf32> -> vector<8x8xf32>
    %cst_20 = arith.constant dense<0xFF800000> : vector<8xf32>
    %38 = vector.multi_reduction <maximumf>, %37, %cst_20 [1] : vector<8x8xf32> to vector<8xf32>
    %39 = vector.shape_cast %38 : vector<8xf32> to vector<8x1xf32>
    %40 = vector.broadcast %39 : vector<8x1xf32> to vector<8x8xf32>
    %41 = arith.subf %37, %40 : vector<8x8xf32>
    %42 = math.exp %41 : vector<8x8xf32>
    %cst_21 = arith.constant dense<0.000000e+00> : vector<8xf32>
    %43 = vector.multi_reduction <add>, %42, %cst_21 [1] : vector<8x8xf32> to vector<8xf32>
    %44 = vector.shape_cast %43 : vector<8xf32> to vector<8x1xf32>
    %45 = tpu.reciprocal %44 {approx = true} : vector<8x1xf32> -> vector<8x1xf32>
    %46 = vector.broadcast %45 : vector<8x1xf32> to vector<8x8xf32>
    %47 = arith.mulf %42, %46 : vector<8x8xf32>
    %48 = arith.truncf %47 : vector<8x8xf32> to vector<8x8xbf16>
    %cst_22 = arith.constant dense<0.000000e+00> : vector<8x8xf32>
    %49 = tpu.matmul %48, %36, %cst_22 {dimension_numbers = #tpu.dot_dimension_numbers<[1], [0], [0], [1], [0, 0, 1, 1], [], []>} : vector<8x8xbf16>, vector<8x8xbf16>, vector<8x8xf32> -> vector<8x8xf32>
    %50 = arith.truncf %49 : vector<8x8xf32> to vector<8x8xbf16>
    %c0_23 = arith.constant 0 : index
    %c8 = arith.constant 8 : index
    %51 = vector.load %arg10[%c0_23, %c8] : memref<16x32xbf16, #tpu.memory_space<vmem>>, vector<8x8xbf16>
    tpu.vector_store %arg10[%c0_23, %c8], %50 {strides = array<i32>} : memref<16x32xbf16, #tpu.memory_space<vmem>>, vector<8x8xbf16>,
    %52 = vector.extract_strided_slice %7 {offsets = [0, 16], sizes = [8, 8], strides = [1, 1]} : vector<16x32xbf16> to vector<8x8xbf16>
    %53 = vector.extract_strided_slice %11 {offsets = [0, 16], sizes = [8, 8], strides = [1, 1]} : vector<16x32xbf16> to vector<8x8xbf16>
    %54 = vector.extract_strided_slice %15 {offsets = [0, 16], sizes = [8, 8], strides = [1, 1]} : vector<16x32xbf16> to vector<8x8xbf16>
    %cst_24 = arith.constant dense<0.000000e+00> : vector<8x8xf32>
    %55 = tpu.matmul %52, %53, %cst_24 {dimension_numbers = #tpu.dot_dimension_numbers<[1], [1], [0], [0], [0, 0, 1, 0], [], []>} : vector<8x8xbf16>, vector<8x8xbf16>, vector<8x8xf32> -> vector<8x8xf32>
    %cst_25 = arith.constant dense<0xFF800000> : vector<8xf32>
    %56 = vector.multi_reduction <maximumf>, %55, %cst_25 [1] : vector<8x8xf32> to vector<8xf32>
    %57 = vector.shape_cast %56 : vector<8xf32> to vector<8x1xf32>
    %58 = vector.broadcast %57 : vector<8x1xf32> to vector<8x8xf32>
    %59 = arith.subf %55, %58 : vector<8x8xf32>
    %60 = math.exp %59 : vector<8x8xf32>
    %cst_26 = arith.constant dense<0.000000e+00> : vector<8xf32>
    %61 = vector.multi_reduction <add>, %60, %cst_26 [1] : vector<8x8xf32> to vector<8xf32>
    %62 = vector.shape_cast %61 : vector<8xf32> to vector<8x1xf32>
    %63 = tpu.reciprocal %62 {approx = true} : vector<8x1xf32> -> vector<8x1xf32>
    %64 = vector.broadcast %63 : vector<8x1xf32> to vector<8x8xf32>
    %65 = arith.mulf %60, %64 : vector<8x8xf32>
    %66 = arith.truncf %65 : vector<8x8xf32> to vector<8x8xbf16>
    %cst_27 = arith.constant dense<0.000000e+00> : vector<8x8xf32>
    %67 = tpu.matmul %66, %54, %cst_27 {dimension_numbers = #tpu.dot_dimension_numbers<[1], [0], [0], [1], [0, 0, 1, 1], [], []>} : vector<8x8xbf16>, vector<8x8xbf16>, vector<8x8xf32> -> vector<8x8xf32>
    %68 = arith.truncf %67 : vector<8x8xf32> to vector<8x8xbf16>
    %c0_28 = arith.constant 0 : index
    %c16 = arith.constant 16 : index
    %69 = vector.load %arg10[%c0_28, %c16] : memref<16x32xbf16, #tpu.memory_space<vmem>>, vector<8x8xbf16>
    tpu.vector_store %arg10[%c0_28, %c16], %68 {strides = array<i32>} : memref<16x32xbf16, #tpu.memory_space<vmem>>, vector<8x8xbf16>,
    %70 = vector.extract_strided_slice %7 {offsets = [0, 24], sizes = [8, 8], strides = [1, 1]} : vector<16x32xbf16> to vector<8x8xbf16>
    %71 = vector.extract_strided_slice %11 {offsets = [0, 24], sizes = [8, 8], strides = [1, 1]} : vector<16x32xbf16> to vector<8x8xbf16>
    %72 = vector.extract_strided_slice %15 {offsets = [0, 24], sizes = [8, 8], strides = [1, 1]} : vector<16x32xbf16> to vector<8x8xbf16>
    %cst_29 = arith.constant dense<0.000000e+00> : vector<8x8xf32>
    %73 = tpu.matmul %70, %71, %cst_29 {dimension_numbers = #tpu.dot_dimension_numbers<[1], [1], [0], [0], [0, 0, 1, 0], [], []>} : vector<8x8xbf16>, vector<8x8xbf16>, vector<8x8xf32> -> vector<8x8xf32>
    %cst_30 = arith.constant dense<0xFF800000> : vector<8xf32>
    %74 = vector.multi_reduction <maximumf>, %73, %cst_30 [1] : vector<8x8xf32> to vector<8xf32>
    %75 = vector.shape_cast %74 : vector<8xf32> to vector<8x1xf32>
    %76 = vector.broadcast %75 : vector<8x1xf32> to vector<8x8xf32>
    %77 = arith.subf %73, %76 : vector<8x8xf32>
    %78 = math.exp %77 : vector<8x8xf32>
    %cst_31 = arith.constant dense<0.000000e+00> : vector<8xf32>
    %79 = vector.multi_reduction <add>, %78, %cst_31 [1] : vector<8x8xf32> to vector<8xf32>
    %80 = vector.shape_cast %79 : vector<8xf32> to vector<8x1xf32>
    %81 = tpu.reciprocal %80 {approx = true} : vector<8x1xf32> -> vector<8x1xf32>
    %82 = vector.broadcast %81 : vector<8x1xf32> to vector<8x8xf32>
    %83 = arith.mulf %78, %82 : vector<8x8xf32>
    %84 = arith.truncf %83 : vector<8x8xf32> to vector<8x8xbf16>
    %cst_32 = arith.constant dense<0.000000e+00> : vector<8x8xf32>
    %85 = tpu.matmul %84, %72, %cst_32 {dimension_numbers = #tpu.dot_dimension_numbers<[1], [0], [0], [1], [0, 0, 1, 1], [], []>} : vector<8x8xbf16>, vector<8x8xbf16>, vector<8x8xf32> -> vector<8x8xf32>
    %86 = arith.truncf %85 : vector<8x8xf32> to vector<8x8xbf16>
    %c0_33 = arith.constant 0 : index
    %c24 = arith.constant 24 : index
    %87 = vector.load %arg10[%c0_33, %c24] : memref<16x32xbf16, #tpu.memory_space<vmem>>, vector<8x8xbf16>
    tpu.vector_store %arg10[%c0_33, %c24], %86 {strides = array<i32>} : memref<16x32xbf16, #tpu.memory_space<vmem>>, vector<8x8xbf16>,
    %88 = vector.extract_strided_slice %7 {offsets = [8, 0], sizes = [8, 8], strides = [1, 1]} : vector<16x32xbf16> to vector<8x8xbf16>
    %89 = vector.extract_strided_slice %11 {offsets = [8, 0], sizes = [8, 8], strides = [1, 1]} : vector<16x32xbf16> to vector<8x8xbf16>
    %90 = vector.extract_strided_slice %15 {offsets = [8, 0], sizes = [8, 8], strides = [1, 1]} : vector<16x32xbf16> to vector<8x8xbf16>
    %cst_34 = arith.constant dense<0.000000e+00> : vector<8x8xf32>
    %91 = tpu.matmul %88, %89, %cst_34 {dimension_numbers = #tpu.dot_dimension_numbers<[1], [1], [0], [0], [0, 0, 1, 0], [], []>} : vector<8x8xbf16>, vector<8x8xbf16>, vector<8x8xf32> -> vector<8x8xf32>
    %cst_35 = arith.constant dense<0xFF800000> : vector<8xf32>
    %92 = vector.multi_reduction <maximumf>, %91, %cst_35 [1] : vector<8x8xf32> to vector<8xf32>
    %93 = vector.shape_cast %92 : vector<8xf32> to vector<8x1xf32>
    %94 = vector.broadcast %93 : vector<8x1xf32> to vector<8x8xf32>
    %95 = arith.subf %91, %94 : vector<8x8xf32>
    %96 = math.exp %95 : vector<8x8xf32>
    %cst_36 = arith.constant dense<0.000000e+00> : vector<8xf32>
    %97 = vector.multi_reduction <add>, %96, %cst_36 [1] : vector<8x8xf32> to vector<8xf32>
    %98 = vector.shape_cast %97 : vector<8xf32> to vector<8x1xf32>
    %99 = tpu.reciprocal %98 {approx = true} : vector<8x1xf32> -> vector<8x1xf32>
    %100 = vector.broadcast %99 : vector<8x1xf32> to vector<8x8xf32>
    %101 = arith.mulf %96, %100 : vector<8x8xf32>
    %102 = arith.truncf %101 : vector<8x8xf32> to vector<8x8xbf16>
    %cst_37 = arith.constant dense<0.000000e+00> : vector<8x8xf32>
    %103 = tpu.matmul %102, %90, %cst_37 {dimension_numbers = #tpu.dot_dimension_numbers<[1], [0], [0], [1], [0, 0, 1, 1], [], []>} : vector<8x8xbf16>, vector<8x8xbf16>, vector<8x8xf32> -> vector<8x8xf32>
    %104 = arith.truncf %103 : vector<8x8xf32> to vector<8x8xbf16>
    %c8_38 = arith.constant 8 : index
    %c0_39 = arith.constant 0 : index
    %105 = vector.load %arg10[%c8_38, %c0_39] : memref<16x32xbf16, #tpu.memory_space<vmem>>, vector<8x8xbf16>
    tpu.vector_store %arg10[%c8_38, %c0_39], %104 {strides = array<i32>} : memref<16x32xbf16, #tpu.memory_space<vmem>>, vector<8x8xbf16>,
    %106 = vector.extract_strided_slice %7 {offsets = [8, 8], sizes = [8, 8], strides = [1, 1]} : vector<16x32xbf16> to vector<8x8xbf16>
    %107 = vector.extract_strided_slice %11 {offsets = [8, 8], sizes = [8, 8], strides = [1, 1]} : vector<16x32xbf16> to vector<8x8xbf16>
    %108 = vector.extract_strided_slice %15 {offsets = [8, 8], sizes = [8, 8], strides = [1, 1]} : vector<16x32xbf16> to vector<8x8xbf16>
    %cst_40 = arith.constant dense<0.000000e+00> : vector<8x8xf32>
    %109 = tpu.matmul %106, %107, %cst_40 {dimension_numbers = #tpu.dot_dimension_numbers<[1], [1], [0], [0], [0, 0, 1, 0], [], []>} : vector<8x8xbf16>, vector<8x8xbf16>, vector<8x8xf32> -> vector<8x8xf32>
    %cst_41 = arith.constant dense<0xFF800000> : vector<8xf32>
    %110 = vector.multi_reduction <maximumf>, %109, %cst_41 [1] : vector<8x8xf32> to vector<8xf32>
    %111 = vector.shape_cast %110 : vector<8xf32> to vector<8x1xf32>
    %112 = vector.broadcast %111 : vector<8x1xf32> to vector<8x8xf32>
    %113 = arith.subf %109, %112 : vector<8x8xf32>
    %114 = math.exp %113 : vector<8x8xf32>
    %cst_42 = arith.constant dense<0.000000e+00> : vector<8xf32>
    %115 = vector.multi_reduction <add>, %114, %cst_42 [1] : vector<8x8xf32> to vector<8xf32>
    %116 = vector.shape_cast %115 : vector<8xf32> to vector<8x1xf32>
    %117 = tpu.reciprocal %116 {approx = true} : vector<8x1xf32> -> vector<8x1xf32>
    %118 = vector.broadcast %117 : vector<8x1xf32> to vector<8x8xf32>
    %119 = arith.mulf %114, %118 : vector<8x8xf32>
    %120 = arith.truncf %119 : vector<8x8xf32> to vector<8x8xbf16>
    %cst_43 = arith.constant dense<0.000000e+00> : vector<8x8xf32>
    %121 = tpu.matmul %120, %108, %cst_43 {dimension_numbers = #tpu.dot_dimension_numbers<[1], [0], [0], [1], [0, 0, 1, 1], [], []>} : vector<8x8xbf16>, vector<8x8xbf16>, vector<8x8xf32> -> vector<8x8xf32>
    %122 = arith.truncf %121 : vector<8x8xf32> to vector<8x8xbf16>
    %c8_44 = arith.constant 8 : index
    %c8_45 = arith.constant 8 : index
    %123 = vector.load %arg10[%c8_44, %c8_45] : memref<16x32xbf16, #tpu.memory_space<vmem>>, vector<8x8xbf16>
    tpu.vector_store %arg10[%c8_44, %c8_45], %122 {strides = array<i32>} : memref<16x32xbf16, #tpu.memory_space<vmem>>, vector<8x8xbf16>,
    %124 = vector.extract_strided_slice %7 {offsets = [8, 16], sizes = [8, 8], strides = [1, 1]} : vector<16x32xbf16> to vector<8x8xbf16>
    %125 = vector.extract_strided_slice %11 {offsets = [8, 16], sizes = [8, 8], strides = [1, 1]} : vector<16x32xbf16> to vector<8x8xbf16>
    %126 = vector.extract_strided_slice %15 {offsets = [8, 16], sizes = [8, 8], strides = [1, 1]} : vector<16x32xbf16> to vector<8x8xbf16>
    %cst_46 = arith.constant dense<0.000000e+00> : vector<8x8xf32>
    %127 = tpu.matmul %124, %125, %cst_46 {dimension_numbers = #tpu.dot_dimension_numbers<[1], [1], [0], [0], [0, 0, 1, 0], [], []>} : vector<8x8xbf16>, vector<8x8xbf16>, vector<8x8xf32> -> vector<8x8xf32>
    %cst_47 = arith.constant dense<0xFF800000> : vector<8xf32>
    %128 = vector.multi_reduction <maximumf>, %127, %cst_47 [1] : vector<8x8xf32> to vector<8xf32>
    %129 = vector.shape_cast %128 : vector<8xf32> to vector<8x1xf32>
    %130 = vector.broadcast %129 : vector<8x1xf32> to vector<8x8xf32>
    %131 = arith.subf %127, %130 : vector<8x8xf32>
    %132 = math.exp %131 : vector<8x8xf32>
    %cst_48 = arith.constant dense<0.000000e+00> : vector<8xf32>
    %133 = vector.multi_reduction <add>, %132, %cst_48 [1] : vector<8x8xf32> to vector<8xf32>
    %134 = vector.shape_cast %133 : vector<8xf32> to vector<8x1xf32>
    %135 = tpu.reciprocal %134 {approx = true} : vector<8x1xf32> -> vector<8x1xf32>
    %136 = vector.broadcast %135 : vector<8x1xf32> to vector<8x8xf32>
    %137 = arith.mulf %132, %136 : vector<8x8xf32>
    %138 = arith.truncf %137 : vector<8x8xf32> to vector<8x8xbf16>
    %cst_49 = arith.constant dense<0.000000e+00> : vector<8x8xf32>
    %139 = tpu.matmul %138, %126, %cst_49 {dimension_numbers = #tpu.dot_dimension_numbers<[1], [0], [0], [1], [0, 0, 1, 1], [], []>} : vector<8x8xbf16>, vector<8x8xbf16>, vector<8x8xf32> -> vector<8x8xf32>
    %140 = arith.truncf %139 : vector<8x8xf32> to vector<8x8xbf16>
    %c8_50 = arith.constant 8 : index
    %c16_51 = arith.constant 16 : index
    %141 = vector.load %arg10[%c8_50, %c16_51] : memref<16x32xbf16, #tpu.memory_space<vmem>>, vector<8x8xbf16>
    tpu.vector_store %arg10[%c8_50, %c16_51], %140 {strides = array<i32>} : memref<16x32xbf16, #tpu.memory_space<vmem>>, vector<8x8xbf16>,
    %142 = vector.extract_strided_slice %7 {offsets = [8, 24], sizes = [8, 8], strides = [1, 1]} : vector<16x32xbf16> to vector<8x8xbf16>
    %143 = vector.extract_strided_slice %11 {offsets = [8, 24], sizes = [8, 8], strides = [1, 1]} : vector<16x32xbf16> to vector<8x8xbf16>
    %144 = vector.extract_strided_slice %15 {offsets = [8, 24], sizes = [8, 8], strides = [1, 1]} : vector<16x32xbf16> to vector<8x8xbf16>
    %cst_52 = arith.constant dense<0.000000e+00> : vector<8x8xf32>
    %145 = tpu.matmul %142, %143, %cst_52 {dimension_numbers = #tpu.dot_dimension_numbers<[1], [1], [0], [0], [0, 0, 1, 0], [], []>} : vector<8x8xbf16>, vector<8x8xbf16>, vector<8x8xf32> -> vector<8x8xf32>
    %cst_53 = arith.constant dense<0xFF800000> : vector<8xf32>
    %146 = vector.multi_reduction <maximumf>, %145, %cst_53 [1] : vector<8x8xf32> to vector<8xf32>
    %147 = vector.shape_cast %146 : vector<8xf32> to vector<8x1xf32>
    %148 = vector.broadcast %147 : vector<8x1xf32> to vector<8x8xf32>
    %149 = arith.subf %145, %148 : vector<8x8xf32>
    %150 = math.exp %149 : vector<8x8xf32>
    %cst_54 = arith.constant dense<0.000000e+00> : vector<8xf32>
    %151 = vector.multi_reduction <add>, %150, %cst_54 [1] : vector<8x8xf32> to vector<8xf32>
    %152 = vector.shape_cast %151 : vector<8xf32> to vector<8x1xf32>
    %153 = tpu.reciprocal %152 {approx = true} : vector<8x1xf32> -> vector<8x1xf32>
    %154 = vector.broadcast %153 : vector<8x1xf32> to vector<8x8xf32>
    %155 = arith.mulf %150, %154 : vector<8x8xf32>
    %156 = arith.truncf %155 : vector<8x8xf32> to vector<8x8xbf16>
    %cst_55 = arith.constant dense<0.000000e+00> : vector<8x8xf32>
    %157 = tpu.matmul %156, %144, %cst_55 {dimension_numbers = #tpu.dot_dimension_numbers<[1], [0], [0], [1], [0, 0, 1, 1], [], []>} : vector<8x8xbf16>, vector<8x8xbf16>, vector<8x8xf32> -> vector<8x8xf32>
    %158 = arith.truncf %157 : vector<8x8xf32> to vector<8x8xbf16>
    %c8_56 = arith.constant 8 : index
    %c24_57 = arith.constant 24 : index
    %159 = vector.load %arg10[%c8_56, %c24_57] : memref<16x32xbf16, #tpu.memory_space<vmem>>, vector<8x8xbf16>
    tpu.vector_store %arg10[%c8_56, %c24_57], %158 {strides = array<i32>} : memref<16x32xbf16, #tpu.memory_space<vmem>>, vector<8x8xbf16>,
    %c0_58 = arith.constant 0 : index
    %c0_59 = arith.constant 0 : index
    %160 = vector.load %arg9[%c0_58, %c0_59] : memref<16x32xf32, #tpu.memory_space<vmem>>, vector<16x32xf32>
    %c0_60 = arith.constant 0 : index
    %c0_61 = arith.constant 0 : index
    %161 = vector.load %arg10[%c0_60, %c0_61] : memref<16x32xbf16, #tpu.memory_space<vmem>>, vector<16x32xbf16>
    %c0_62 = arith.constant 0 : index
    %c0_63 = arith.constant 0 : index
    %c0_64 = arith.constant 0 : index
    %162 = vector.load %arg6[%c0_62, %c0_63, %c0_64] : memref<1x32x32xbf16, #tpu.memory_space<vmem>>, vector<1x32x32xbf16>
    %163 = vector.shape_cast %162 : vector<1x32x32xbf16> to vector<32x32xbf16>
    %cst_65 = arith.constant dense<0.000000e+00> : vector<16x32xf32>
    %164 = tpu.matmul %161, %163, %cst_65 {dimension_numbers = #tpu.dot_dimension_numbers<[1], [0], [0], [1], [0, 0, 1, 1], [], []>} : vector<16x32xbf16>, vector<32x32xbf16>, vector<16x32xf32> -> vector<16x32xf32>
    %165 = arith.addf %160, %164 : vector<16x32xf32>
    %c0_66 = arith.constant 0 : index
    %c0_67 = arith.constant 0 : index
    %166 = vector.load %arg9[%c0_66, %c0_67] : memref<16x32xf32, #tpu.memory_space<vmem>>, vector<16x32xf32>
    tpu.vector_store %arg9[%c0_66, %c0_67], %165 {strides = array<i32>} : memref<16x32xf32, #tpu.memory_space<vmem>>, vector<16x32xf32>,
    %c0_i32_68 = arith.constant 0 : i32
    %167 = arith.cmpi eq, %arg1, %c0_i32_68 : i32
    %168 = arith.extui %167 : i1 to i32
    %c0_i32_69 = arith.constant 0 : i32
    %169 = arith.cmpi ne, %168, %c0_i32_69 : i32
    scf.if %169 {
      %c0_70 = arith.constant 0 : index
      %c0_71 = arith.constant 0 : index
      %170 = vector.load %arg9[%c0_70, %c0_71] : memref<16x32xf32, #tpu.memory_space<vmem>>, vector<16x32xf32>
      %c0_72 = arith.constant 0 : index
      %c0_73 = arith.constant 0 : index
      %171 = vector.load %arg7[%c0_72, %c0_73] : memref<1x32xf32, #tpu.memory_space<vmem>>, vector<1x32xf32>
      %172 = vector.broadcast %171 : vector<1x32xf32> to vector<16x32xf32>
      %173 = arith.addf %170, %172 : vector<16x32xf32>
      %c0_74 = arith.constant 0 : index
      %c0_75 = arith.constant 0 : index
      %174 = vector.load %arg8[%c0_74, %c0_75] : memref<16x32xf32, #tpu.memory_space<vmem>>, vector<16x32xf32>
      tpu.vector_store %arg8[%c0_74, %c0_75], %173 {strides = array<i32>} : memref<16x32xf32, #tpu.memory_space<vmem>>, vector<16x32xf32>,
    } else {
    }
    return
  }
  func.func @transform_0(%arg0: i32, %arg1: i32) -> (i32, i32) {
    %c0_i32 = arith.constant 0 : i32
    %c0_i32_0 = arith.constant 0 : i32
    return %arg0, %c0_i32 : i32, i32
  }
  func.func @transform_1(%arg0: i32, %arg1: i32) -> (i32, i32, i32) {
    %c0_i32 = arith.constant 0 : i32
    %c0_i32_0 = arith.constant 0 : i32
    %c0_i32_1 = arith.constant 0 : i32
    return %arg1, %c0_i32, %c0_i32_0 : i32, i32, i32
  }
  func.func @transform_2(%arg0: i32, %arg1: i32) -> (i32, i32, i32) {
    %c0_i32 = arith.constant 0 : i32
    %c0_i32_0 = arith.constant 0 : i32
    %c0_i32_1 = arith.constant 0 : i32
    return %arg1, %c0_i32, %c0_i32_0 : i32, i32, i32
  }
  func.func @transform_3(%arg0: i32, %arg1: i32) -> (i32, i32, i32) {
    %c0_i32 = arith.constant 0 : i32
    %c0_i32_0 = arith.constant 0 : i32
    %c0_i32_1 = arith.constant 0 : i32
    return %arg1, %c0_i32, %c0_i32_0 : i32, i32, i32
  }
  func.func @transform_4(%arg0: i32, %arg1: i32) -> (i32, i32, i32) {
    %c0_i32 = arith.constant 0 : i32
    %c0_i32_0 = arith.constant 0 : i32
    %c0_i32_1 = arith.constant 0 : i32
    return %arg1, %c0_i32, %c0_i32_0 : i32, i32, i32
  }
  func.func @transform_5(%arg0: i32, %arg1: i32) -> (i32, i32) {
    %c0_i32 = arith.constant 0 : i32
    %c0_i32_0 = arith.constant 0 : i32
    %c0_i32_1 = arith.constant 0 : i32
    return %c0_i32, %c0_i32_0 : i32, i32
  }
  func.func @transform_6(%arg0: i32, %arg1: i32) -> (i32, i32) {
    %c0_i32 = arith.constant 0 : i32
    %c0_i32_0 = arith.constant 0 : i32
    return %arg0, %c0_i32 : i32, i32
  }
}

</mosaic_0001>

<llo_original>
// kernel: tpu_custom_call.1
$region0: #{tpu_custom_call.1}
  #allocation0 [shape = 'u32[]', space=smem, size = 0x4, offset = 0x4, fixed_abs, tag = 'smem constant byte address 0x4 - core index']
  #allocation1 [shape = 'u32[144,128]{1,0:T(1,128)}', space=vmem, size = 0x12000, scoped, tag = 'internal scratch']
  #allocation2 [shape = 'f32[16,32]{1,0:T(8,128)}', space=vmem, size = 0x2000, scoped, tag = 'scratch operand']
  #allocation3 [shape = 'bf16[16,32]{1,0:T(16,128)(2,1)}', space=vmem, size = 0x1000, scoped, tag = 'scratch operand']
  %s0 = inlined_call_operand.hbm [shape: bf16[32,32], index: 0, kind: input, shape index: {}]
  %s1 = inlined_call_operand.hbm [shape: bf16[1,32,32], index: 1, kind: input, shape index: {}]
  %s2 = inlined_call_operand.hbm [shape: bf16[1,32,32], index: 2, kind: input, shape index: {}]
  %s3 = inlined_call_operand.hbm [shape: bf16[1,32,32], index: 3, kind: input, shape index: {}]
  %s4 = inlined_call_operand.hbm [shape: bf16[1,32,32], index: 4, kind: input, shape index: {}]
  %s5 = inlined_call_operand.vmem [shape: f32[1,32], index: 5, kind: input, shape index: {}]
  %s6 = inlined_call_operand.hbm [shape: f32[32,32], index: 6, kind: output, shape index: {}]
  %s7 = sld [smem:[#allocation0]]
  $region85: #{tpu_custom_call.1} parent=0
    _
  %s9 = ssub.s32 1, %s7
  %s10 = scalar_select 0, %s9, %s7
  $region1: #{tpu_custom_call.1} parent=0
    #allocation4 [shape = 'u8[8192]{0}', space=vmem, size = 0x2000, scoped, tag = 'input window, operand 0']
    #allocation5 [shape = 's32[2]{0}', space=sflag, size = 0x8, scoped, tag = 'scoped memory for tpu_custom_call.1']
    #allocation6 [shape = 's32[2]{0}', space=sflag, size = 0x8, scoped, tag = 'scoped memory for tpu_custom_call.1']
    #allocation7 [shape = 'u8[8192]{0}', space=vmem, size = 0x2000, scoped, tag = 'input window, operand 1, single buffered']
    #allocation8 [shape = 's32[1]{0}', space=sflag, size = 0x4, scoped, tag = 'scoped memory for tpu_custom_call.1']
    #allocation9 [shape = 'u8[8192]{0}', space=vmem, size = 0x2000, scoped, tag = 'input window, operand 2, single buffered']
    #allocation10 [shape = 'u8[8192]{0}', space=vmem, size = 0x2000, scoped, tag = 'input window, operand 3, single buffered']
    #allocation11 [shape = 's32[1]{0}', space=sflag, size = 0x4, scoped, tag = 'scoped memory for tpu_custom_call.1']
    #allocation12 [shape = 'u8[8192]{0}', space=vmem, size = 0x2000, scoped, tag = 'input window, operand 4, single buffered']
    #allocation13 [shape = 'u8[16384]{0}', space=vmem, size = 0x4000, scoped, tag = 'output window, operand 0']
    %11 = vsyncpa [#allocation5], 0
    %s12 = scalar_lea.sflag [#allocation5], 1
    %13 = vsyncpa %s12, 0
    %14 = vsyncpa [#allocation8], 0
    %15 = vsyncpa [#allocation11], 0
    %16 = vsyncpa [#allocation6], 0
    %s17 = scalar_lea.sflag [#allocation6], 1
    %18 = vsyncpa %s17, 0
    loop: start=0, step=1, limit=4
    $region2: #{tpu_custom_call.1} parent=1 // loop_pre_header
      _
    $region3: #{tpu_custom_call.1} parent=1 // loop_header
      %s20 = sphi 0, %s24
      %p21 = scmp.ge.s32.totalorder %s20, 4
      %s27 = sphi 0, %s39
      %s28 = sphi 0, %s35
      %s29 = sphi 0, %s27
      %s30 = sphi 0, %s28
      %s31 = sphi 0, %s29
      %s32 = sphi 0, %s30
      %s42 = sphi 0, %s44
      %s45 = sphi 0, %s42
      %s46 = sphi 0, %s45
      %s62 = sphi 0, %s46
      %s68 = sphi 0, %s70
      %s71 = sphi 0, %s68
      %s72 = sphi 0, %s71
      %s88 = sphi 0, %s72
      %s94 = sphi 0, %s96
      %s97 = sphi 0, %s94
      %s98 = sphi 0, %s97
      %s114 = sphi 0, %s98
      %s120 = sphi 0, %s122
      %s123 = sphi 0, %s120
      %s124 = sphi 0, %s123
      %s140 = sphi 0, %s124
      %s146 = sphi 0, %s148
      %s149 = sphi 0, %s146
      %s150 = sphi 0, %s149
      %s166 = sphi 0, %s150
      %s170 = sphi 0, %s170
      %s172 = sphi 0, %s170
      %s173 = sphi 0, %s172
      %s187 = sphi 0, %s173
      %s193 = sphi 0, %s195
      %s196 = sphi 0, %s193
      %s197 = sphi 0, %s196
      %s213 = sphi 0, %s197
    $region4: #{tpu_custom_call.1} parent=1 // loop_header_branch
      %23 = sbr.rel (%p21) target = $region8
    $region5: #{tpu_custom_call.1} parent=1 // loop_body
      %s25 = ssub.s32 %s20, 1
      %s26 = ssub.s32 %s20, 2
      %s33 = sadd.s32 1, %s28
      %p34 = scmp.ge.s32.totalorder %s33, 1
      %s35 = scalar_select %p34, 0, %s33
      %s36 = sadd.s32 1, %s27
      %s37 = scalar_select %p34, %s36, %s27
      %p38 = scmp.ge.s32.totalorder %s37, 2
      %s39 = scalar_select %p38, 0, %s37
      %s40 = ssub.s32 %s27, %s39
      %p41 = scmp.eq.s32.totalorder %s40, 0
      %s43 = sadd.s32 %s42, 1
      %s44 = scalar_select %p41, %s42, %s43
      %p47 = pneg %p41
      %p48 = scmp.eq.s32.totalorder %s20, 1
      %p49 = por %p47, %p48
      %p50 = scmp.ne.s32.totalorder %s42, %s45
      %p51 = scmp.eq.s32.totalorder %s20, 0
      %p52 = por %p50, %p51
      %p53 = scmp.ne.s32.totalorder %s42, %s45
      %p54 = scmp.eq.s32.totalorder %s25, 1
      %p55 = por %p53, %p54
      %p56 = scmp.ne.s32.totalorder %s45, %s46
      %p57 = scmp.eq.s32.totalorder %s25, 0
      %p58 = por %p56, %p57
      %p59 = scmp.ne.s32.totalorder %s45, %s46
      %p60 = scmp.eq.s32.totalorder %s26, 1
      %p61 = por %p59, %p60
      %p63 = scmp.ne.s32.totalorder %s46, %s62
      %p64 = scmp.eq.s32.totalorder %s26, 0
      %p65 = por %p63, %p64
      %s66 = ssub.s32 %s28, %s35
      %p67 = scmp.eq.s32.totalorder %s66, 0
      %s69 = sadd.s32 %s68, 1
      %s70 = scalar_select %p67, %s68, %s69
      %p73 = pneg %p67
      %p74 = scmp.eq.s32.totalorder %s20, 1
      %p75 = por %p73, %p74
      %p76 = scmp.ne.s32.totalorder %s68, %s71
      %p77 = scmp.eq.s32.totalorder %s20, 0
      %p78 = por %p76, %p77
      %p79 = scmp.ne.s32.totalorder %s68, %s71
      %p80 = scmp.eq.s32.totalorder %s25, 1
      %p81 = por %p79, %p80
      %p82 = scmp.ne.s32.totalorder %s71, %s72
      %p83 = scmp.eq.s32.totalorder %s25, 0
      %p84 = por %p82, %p83
      %p85 = scmp.ne.s32.totalorder %s71, %s72
      %p86 = scmp.eq.s32.totalorder %s26, 1
      %p87 = por %p85, %p86
      %p89 = scmp.ne.s32.totalorder %s72, %s88
      %p90 = scmp.eq.s32.totalorder %s26, 0
      %p91 = por %p89, %p90
      %s92 = ssub.s32 %s28, %s35
      %p93 = scmp.eq.s32.totalorder %s92, 0
      %s95 = sadd.s32 %s94, 1
      %s96 = scalar_select %p93, %s94, %s95
      %p99 = pneg %p93
      %p100 = scmp.eq.s32.totalorder %s20, 1
      %p101 = por %p99, %p100
      %p102 = scmp.ne.s32.totalorder %s94, %s97
      %p103 = scmp.eq.s32.totalorder %s20, 0
      %p104 = por %p102, %p103
      %p105 = scmp.ne.s32.totalorder %s94, %s97
      %p106 = scmp.eq.s32.totalorder %s25, 1
      %p107 = por %p105, %p106
      %p108 = scmp.ne.s32.totalorder %s97, %s98
      %p109 = scmp.eq.s32.totalorder %s25, 0
      %p110 = por %p108, %p109
      %p111 = scmp.ne.s32.totalorder %s97, %s98
      %p112 = scmp.eq.s32.totalorder %s26, 1
      %p113 = por %p111, %p112
      %p115 = scmp.ne.s32.totalorder %s98, %s114
      %p116 = scmp.eq.s32.totalorder %s26, 0
      %p117 = por %p115, %p116
      %s118 = ssub.s32 %s28, %s35
      %p119 = scmp.eq.s32.totalorder %s118, 0
      %s121 = sadd.s32 %s120, 1
      %s122 = scalar_select %p119, %s120, %s121
      %p125 = pneg %p119
      %p126 = scmp.eq.s32.totalorder %s20, 1
      %p127 = por %p125, %p126
      %p128 = scmp.ne.s32.totalorder %s120, %s123
      %p129 = scmp.eq.s32.totalorder %s20, 0
      %p130 = por %p128, %p129
      %p131 = scmp.ne.s32.totalorder %s120, %s123
      %p132 = scmp.eq.s32.totalorder %s25, 1
      %p133 = por %p131, %p132
      %p134 = scmp.ne.s32.totalorder %s123, %s124
      %p135 = scmp.eq.s32.totalorder %s25, 0
      %p136 = por %p134, %p135
      %p137 = scmp.ne.s32.totalorder %s123, %s124
      %p138 = scmp.eq.s32.totalorder %s26, 1
      %p139 = por %p137, %p138
      %p141 = scmp.ne.s32.totalorder %s124, %s140
      %p142 = scmp.eq.s32.totalorder %s26, 0
      %p143 = por %p141, %p142
      %s144 = ssub.s32 %s28, %s35
      %p145 = scmp.eq.s32.totalorder %s144, 0
      %s147 = sadd.s32 %s146, 1
      %s148 = scalar_select %p145, %s146, %s147
      %p151 = pneg %p145
      %p152 = scmp.eq.s32.totalorder %s20, 1
      %p153 = por %p151, %p152
      %p154 = scmp.ne.s32.totalorder %s146, %s149
      %p155 = scmp.eq.s32.totalorder %s20, 0
      %p156 = por %p154, %p155
      %p157 = scmp.ne.s32.totalorder %s146, %s149
      %p158 = scmp.eq.s32.totalorder %s25, 1
      %p159 = por %p157, %p158
      %p160 = scmp.ne.s32.totalorder %s149, %s150
      %p161 = scmp.eq.s32.totalorder %s25, 0
      %p162 = por %p160, %p161
      %p163 = scmp.ne.s32.totalorder %s149, %s150
      %p164 = scmp.eq.s32.totalorder %s26, 1
      %p165 = por %p163, %p164
      %p167 = scmp.ne.s32.totalorder %s150, %s166
      %p168 = scmp.eq.s32.totalorder %s26, 0
      %p169 = por %p167, %p168
      %s171 = sadd.s32 %s170, 1
      %p174 = scmp.eq.s32.totalorder %s20, 1
      %p175 = scmp.ne.s32.totalorder %s170, %s172
      %p176 = scmp.eq.s32.totalorder %s20, 0
      %p177 = por %p175, %p176
      %p178 = scmp.ne.s32.totalorder %s170, %s172
      %p179 = scmp.eq.s32.totalorder %s25, 1
      %p180 = por %p178, %p179
      %p181 = scmp.ne.s32.totalorder %s172, %s173
      %p182 = scmp.eq.s32.totalorder %s25, 0
      %p183 = por %p181, %p182
      %p184 = scmp.ne.s32.totalorder %s172, %s173
      %p185 = scmp.eq.s32.totalorder %s26, 1
      %p186 = por %p184, %p185
      %p188 = scmp.ne.s32.totalorder %s173, %s187
      %p189 = scmp.eq.s32.totalorder %s26, 0
      %p190 = por %p188, %p189
      %s191 = ssub.s32 %s27, %s39
      %p192 = scmp.eq.s32.totalorder %s191, 0
      %s194 = sadd.s32 %s193, 1
      %s195 = scalar_select %p192, %s193, %s194
      %p198 = pneg %p192
      %p199 = scmp.eq.s32.totalorder %s20, 1
      %p200 = por %p198, %p199
      %p201 = scmp.ne.s32.totalorder %s193, %s196
      %p202 = scmp.eq.s32.totalorder %s20, 0
      %p203 = por %p201, %p202
      %p204 = scmp.ne.s32.totalorder %s193, %s196
      %p205 = scmp.eq.s32.totalorder %s25, 1
      %p206 = por %p204, %p205
      %p207 = scmp.ne.s32.totalorder %s196, %s197
      %p208 = scmp.eq.s32.totalorder %s25, 0
      %p209 = por %p207, %p208
      %p210 = scmp.ne.s32.totalorder %s196, %s197
      %p211 = scmp.eq.s32.totalorder %s26, 1
      %p212 = por %p210, %p211
      %p214 = scmp.ne.s32.totalorder %s197, %s213
      %p215 = scmp.eq.s32.totalorder %s26, 0
      %p216 = por %p214, %p215
      %p217 = scmp.le.s32.totalorder 1, %s20
      %p218 = scmp.lt.s32.totalorder %s20, 3
      %p219 = pnand %p217, %p218
      %p220 = pneg %p219
      // Predicated region
      $region9: #{tpu_custom_call.1} parent=5 // pred_check
        _
      $region10: #{tpu_custom_call.1} parent=5 // pred_check_branch
        %222 = sbr.rel (%p219) target = $region12
      $region11: #{tpu_custom_call.1} parent=5 // pred_region
        %s223 = ssub.s32 %s20, 1
        // Predicated region
        $region13: #{tpu_custom_call.1} parent=11 // pred_check
          %p224 = pneg %p84
        $region14: #{tpu_custom_call.1} parent=11 // pred_check_branch
          %226 = sbr.rel (%p224) target = $region16
        $region15: #{tpu_custom_call.1} parent=11 // pred_region
          %s228 = ssub.s32 256, 256
          %229 = vsyncadd [#allocation8], %s228
          %s230 = smul.addr %s30, 4
          %s231 = smul.addr %s230, 64
          %s232 = scalar_lea.hbm %s1, %s231
          %s233 = sshll.u32 [#allocation7], 4
          %s234 = int_to_ptr.vmem [resolvable:$true] %s233
          %239 = dma.hbm_to_vmem [thread:$0]  %s232, 256, %s234, [#allocation8], 64, 64, 4
        $region16: #{tpu_custom_call.1} parent=11 // pred_fallthru
          _
        // Predicated region
        $region17: #{tpu_custom_call.1} parent=11 // pred_check
          %p240 = pneg %p110
        $region18: #{tpu_custom_call.1} parent=11 // pred_check_branch
          %242 = sbr.rel (%p240) target = $region20
        $region19: #{tpu_custom_call.1} parent=11 // pred_region
          %s244 = ssub.s32 256, 256
          %245 = vsyncadd [#allocation8], %s244
          %s246 = smul.addr %s30, 4
          %s247 = smul.addr %s246, 64
          %s248 = scalar_lea.hbm %s2, %s247
          %s249 = sshll.u32 [#allocation9], 4
          %s250 = int_to_ptr.vmem [resolvable:$true] %s249
          %255 = dma.hbm_to_vmem [thread:$0]  %s248, 256, %s250, [#allocation8], 64, 64, 4
        $region20: #{tpu_custom_call.1} parent=11 // pred_fallthru
          _
        // Predicated region
        $region21: #{tpu_custom_call.1} parent=11 // pred_check
          %p256 = pneg %p136
        $region22: #{tpu_custom_call.1} parent=11 // pred_check_branch
          %258 = sbr.rel (%p256) target = $region24
        $region23: #{tpu_custom_call.1} parent=11 // pred_region
          %s260 = ssub.s32 256, 256
          %261 = vsyncadd [#allocation11], %s260
          %s262 = smul.addr %s30, 4
          %s263 = smul.addr %s262, 64
          %s264 = scalar_lea.hbm %s3, %s263
          %s265 = sshll.u32 [#allocation10], 4
          %s266 = int_to_ptr.vmem [resolvable:$true] %s265
          %271 = dma.hbm_to_vmem [thread:$0]  %s264, 256, %s266, [#allocation11], 64, 64, 4
        $region24: #{tpu_custom_call.1} parent=11 // pred_fallthru
          _
        // Predicated region
        $region25: #{tpu_custom_call.1} parent=11 // pred_check
          %p272 = pneg %p162
        $region26: #{tpu_custom_call.1} parent=11 // pred_check_branch
          %274 = sbr.rel (%p272) target = $region28
        $region27: #{tpu_custom_call.1} parent=11 // pred_region
          %s276 = ssub.s32 256, 256
          %277 = vsyncadd [#allocation11], %s276
          %s278 = smul.addr %s30, 4
          %s279 = smul.addr %s278, 64
          %s280 = scalar_lea.hbm %s4, %s279
          %s281 = sshll.u32 [#allocation12], 4
          %s282 = int_to_ptr.vmem [resolvable:$true] %s281
          %287 = dma.hbm_to_vmem [thread:$0]  %s280, 256, %s282, [#allocation11], 64, 64, 4
        $region28: #{tpu_custom_call.1} parent=11 // pred_fallthru
          _
        // Predicated region
        $region29: #{tpu_custom_call.1} parent=11 // pred_check
          %p288 = pneg %p183
        $region30: #{tpu_custom_call.1} parent=11 // pred_check_branch
          %290 = sbr.rel (%p288) target = $region32
        $region31: #{tpu_custom_call.1} parent=11 // pred_region
          _
        $region32: #{tpu_custom_call.1} parent=11 // pred_fallthru
          _
      $region12: #{tpu_custom_call.1} parent=5 // pred_fallthru
        _
      %p291 = scmp.lt.s32.totalorder %s20, 2
      // Predicated region
      $region33: #{tpu_custom_call.1} parent=5 // pred_check
        %p292 = pneg %p291
      $region34: #{tpu_custom_call.1} parent=5 // pred_check_branch
        %294 = sbr.rel (%p292) target = $region36
      $region35: #{tpu_custom_call.1} parent=5 // pred_region
        // Predicated region
        $region37: #{tpu_custom_call.1} parent=35 // pred_check
          %p295 = pneg %p52
        $region38: #{tpu_custom_call.1} parent=35 // pred_check_branch
          %297 = sbr.rel (%p295) target = $region40
        $region39: #{tpu_custom_call.1} parent=35 // pred_region
          %s298 = sand.u32 %s42, 1
          %s299 = scalar_lea.sflag [#allocation5], %s298
          %s300 = sand.u32 %s42, 1
          %s301 = smul.addr %s300, 8
          %s302 = scalar_lea.vmem [#allocation4], %s301
          %s303 = smul.u32 2, %s27
          %s305 = ssub.s32 128, 128
          %306 = vsyncadd %s299, %s305
          %s307 = smul.addr %s303, 64
          %s308 = scalar_lea.hbm %s0, %s307
          %s309 = sshll.u32 %s302, 4
          %s310 = int_to_ptr.vmem [resolvable:$true] %s309
          %315 = dma.hbm_to_vmem [thread:$0]  %s308, 128, %s310, %s299, 64, 64, 4
        $region40: #{tpu_custom_call.1} parent=35 // pred_fallthru
          _
      $region36: #{tpu_custom_call.1} parent=5 // pred_fallthru
        _
      %p316 = scmp.le.s32.totalorder 1, %s20
      %p317 = scmp.lt.s32.totalorder %s20, 3
      %p318 = pnand %p316, %p317
      %p319 = pneg %p318
      // Predicated region
      $region41: #{tpu_custom_call.1} parent=5 // pred_check
        _
      $region42: #{tpu_custom_call.1} parent=5 // pred_check_branch
        %321 = sbr.rel (%p318) target = $region44
      $region43: #{tpu_custom_call.1} parent=5 // pred_region
        %s322 = ssub.s32 %s20, 1
        %s323 = sand.u32 %s45, 1
        %s324 = scalar_lea.sflag [#allocation5], %s323
        %s325 = sand.u32 %s45, 1
        %s326 = smul.addr %s325, 8
        %s327 = scalar_lea.vmem [#allocation4], %s326
        // Predicated region
        $region45: #{tpu_custom_call.1} parent=43 // pred_check
          %p328 = pneg %p58
        $region46: #{tpu_custom_call.1} parent=43 // pred_check_branch
          %330 = sbr.rel (%p328) target = $region48
        $region47: #{tpu_custom_call.1} parent=43 // pred_region
          %331 = dma.done %s324, 128
        $region48: #{tpu_custom_call.1} parent=43 // pred_fallthru
          _
        // Predicated region
        $region49: #{tpu_custom_call.1} parent=43 // pred_check
          %p332 = pneg %p84
        $region50: #{tpu_custom_call.1} parent=43 // pred_check_branch
          %334 = sbr.rel (%p332) target = $region52
        $region51: #{tpu_custom_call.1} parent=43 // pred_region
          %335 = dma.done [#allocation8], 256
        $region52: #{tpu_custom_call.1} parent=43 // pred_fallthru
          _
        // Predicated region
        $region53: #{tpu_custom_call.1} parent=43 // pred_check
          %p336 = pneg %p110
        $region54: #{tpu_custom_call.1} parent=43 // pred_check_branch
          %338 = sbr.rel (%p336) target = $region56
        $region55: #{tpu_custom_call.1} parent=43 // pred_region
          %339 = dma.done [#allocation8], 256
        $region56: #{tpu_custom_call.1} parent=43 // pred_fallthru
          _
        // Predicated region
        $region57: #{tpu_custom_call.1} parent=43 // pred_check
          %p340 = pneg %p136
        $region58: #{tpu_custom_call.1} parent=43 // pred_check_branch
          %342 = sbr.rel (%p340) target = $region60
        $region59: #{tpu_custom_call.1} parent=43 // pred_region
          %343 = dma.done [#allocation11], 256
        $region60: #{tpu_custom_call.1} parent=43 // pred_fallthru
          _
        // Predicated region
        $region61: #{tpu_custom_call.1} parent=43 // pred_check
          %p344 = pneg %p162
        $region62: #{tpu_custom_call.1} parent=43 // pred_check_branch
          %346 = sbr.rel (%p344) target = $region64
        $region63: #{tpu_custom_call.1} parent=43 // pred_region
          %347 = dma.done [#allocation11], 256
        $region64: #{tpu_custom_call.1} parent=43 // pred_fallthru
          _
        %s348 = sand.u32 %s45, 1
        %s349 = scalar_lea.sflag [#allocation5], %s348
        %s350 = sand.u32 %s45, 1
        %s351 = smul.addr %s350, 8
        %s352 = scalar_lea.vmem [#allocation4], %s351
        %p353 = pneg %p58
        %p354 = pneg %p55
        %p355 = pneg %p84
        %p356 = pneg %p81
        %p357 = pneg %p110
        %p358 = pneg %p107
        %p359 = pneg %p136
        %p360 = pneg %p133
        %p361 = pneg %p162
        %p362 = pneg %p159
        %p363 = pneg %p183
        %p364 = pneg %p180
        %p365 = pneg %p209
        %p366 = pneg %p206
        %s367 = sand.u32 %s196, 1
        %s368 = scalar_lea.sflag [#allocation6], %s367
        %s369 = sand.u32 %s196, 1
        %s370 = smul.addr %s369, 16
        %s371 = scalar_lea.vmem [#allocation13], %s370
        %s372 = smul.u32 2, %s29
        %s373 = smul.u32 2, %s29
        %p375 = scmp.eq.s32.totalorder %s30, 0
        // Predicated region
        $region65: #{tpu_custom_call.1} parent=43 // pred_check
          %p376 = pneg %p375
        $region66: #{tpu_custom_call.1} parent=43 // pred_check_branch
          %378 = sbr.rel (%p376) target = $region68
        $region67: #{tpu_custom_call.1} parent=43 // pred_region
          %vm379 = vcmask 261120
          %380 = vst.msk [vmem:[#allocation2] sm:$0xff] %vm379, 0.0
          %381 = vst.msk [vmem:[#allocation2 + $0x8] sm:$0xff] %vm379, 0.0
        $region68: #{tpu_custom_call.1} parent=43 // pred_fallthru
          _
        %v382 = vld [vmem:[%s327] sm:$0xf]
        %v383 = vld [vmem:[%s327 + $0x4] sm:$0xf]
        %v384 = vld [vmem:[#allocation7] sm:$0xf]
        %v385 = vld [vmem:[#allocation7 + $0x4] sm:$0xf]
        %v386 = vld [vmem:[#allocation7 + $0x8] sm:$0xf]
        %v387 = vld [vmem:[#allocation7 + $0xc] sm:$0xf]
        %v390 = vunpack.c.l.b16 %v382
        %v391 = vunpack.c.l.b16 %v383
        %v392 = vpack.c.b16 %v391, %v390
        %v397 = vunpack.c.l.b16 %v384
        %v398 = vunpack.c.l.b16 %v385
        %v399 = vunpack.c.l.b16 %v386
        %v400 = vunpack.c.l.b16 %v387
        %v401 = vpack.c.b16 %v398, %v397
        %v402 = vpack.c.b16 %v400, %v399
        %vm405 = vcmask 261120
        %v407 = vsel %vm405, %v392, 0
        %409 = vmatprep.subr.bf16.mxu0 0
        %410 = vmatpush1.bf16.msra.mxu0 %v401
        %411 = vmatprep.subr.bf16.mxu0 0
        %412 = vmatpush1.bf16.msra.mxu0 %v402
        %413 = vmatprep.subr.bf16.mxu0 0
        %414 = vmatpush1.bf16.msra.mxu0 0
        %415 = vmatprep.subr.bf16.mxu0 0
        %416 = vmatpush1.bf16.msra.mxu0 0
        %417 = vmatprep.subr.bf16.mxu0 0
        %418 = vmatpush1.bf16.msra.mxu0 0
        %419 = vmatprep.subr.bf16.mxu0 0
        %420 = vmatpush1.bf16.msra.mxu0 0
        %421 = vmatprep.subr.bf16.mxu0 0
        %422 = vmatpush1.bf16.msra.mxu0 0
        %423 = vmatprep.subr.bf16.mxu0 0
        %424 = vmatpush1.bf16.msra.mxu0 0
        %425 = vmatprep.subr.bf16.mxu0 0
        %426 = vmatpush1.bf16.msra.mxu0 0
        %427 = vmatprep.subr.bf16.mxu0 0
        %428 = vmatpush1.bf16.msra.mxu0 0
        %429 = vmatprep.subr.bf16.mxu0 0
        %430 = vmatpush1.bf16.msra.mxu0 0
        %431 = vmatprep.subr.bf16.mxu0 0
        %432 = vmatpush1.bf16.msra.mxu0 0
        %433 = vmatprep.subr.bf16.mxu0 0
        %434 = vmatpush1.bf16.msra.mxu0 0
        %435 = vmatprep.subr.bf16.mxu0 0
        %436 = vmatpush1.bf16.msra.mxu0 0
        %437 = vmatprep.subr.bf16.mxu0 0
        %438 = vmatpush1.bf16.msra.mxu0 0
        %439 = vmatprep.subr.bf16.mxu0 0
        %440 = vmatpush1.bf16.msra.mxu0 0
        %441 = vmatprep.mubr.bf16.mxu0 0
        %442 = vmatmul.mubr.bf16.gmra.mrb[0].mxu0 %v407
        %v443 = vpop.f32.mrb[0].mxu0
        %v444 = vadd.f32 0.0, %v443
        %v445 = vpop.f32.mrb[0].mxu0
        %v446 = vpop.f32.mrb[0].mxu0
        %v447 = vadd.f32 0.0, %v446
        %v448 = vpop.f32.mrb[0].mxu0
        %449 = vdwg.mxu0
        %v450 = vpack.c.bf16 %v447, %v444
        %v451 = vld [vmem:[#allocation9] sm:$0xf]
        %v452 = vld [vmem:[#allocation9 + $0x4] sm:$0xf]
        %v453 = vld [vmem:[#allocation9 + $0x8] sm:$0xf]
        %v454 = vld [vmem:[#allocation9 + $0xc] sm:$0xf]
        %v459 = vunpack.c.l.b16 %v451
        %v460 = vunpack.c.l.b16 %v452
        %v461 = vunpack.c.l.b16 %v453
        %v462 = vunpack.c.l.b16 %v454
        %v463 = vpack.c.b16 %v460, %v459
        %v464 = vpack.c.b16 %v462, %v461
        %467 = vmatprep.subr.bf16.mxu0 0
        %468 = vmatpush1.bf16.msra.mxu0 %v463
        %469 = vmatprep.subr.bf16.mxu0 0
        %470 = vmatpush1.bf16.msra.mxu0 %v464
        %471 = vmatprep.subr.bf16.mxu0 0
        %472 = vmatpush1.bf16.msra.mxu0 0
        %473 = vmatprep.subr.bf16.mxu0 0
        %474 = vmatpush1.bf16.msra.mxu0 0
        %475 = vmatprep.subr.bf16.mxu0 0
        %476 = vmatpush1.bf16.msra.mxu0 0
        %477 = vmatprep.subr.bf16.mxu0 0
        %478 = vmatpush1.bf16.msra.mxu0 0
        %479 = vmatprep.subr.bf16.mxu0 0
        %480 = vmatpush1.bf16.msra.mxu0 0
        %481 = vmatprep.subr.bf16.mxu0 0
        %482 = vmatpush1.bf16.msra.mxu0 0
        %483 = vmatprep.subr.bf16.mxu0 0
        %484 = vmatpush1.bf16.msra.mxu0 0
        %485 = vmatprep.subr.bf16.mxu0 0
        %486 = vmatpush1.bf16.msra.mxu0 0
        %487 = vmatprep.subr.bf16.mxu0 0
        %488 = vmatpush1.bf16.msra.mxu0 0
        %489 = vmatprep.subr.bf16.mxu0 0
        %490 = vmatpush1.bf16.msra.mxu0 0
        %491 = vmatprep.subr.bf16.mxu0 0
        %492 = vmatpush1.bf16.msra.mxu0 0
        %493 = vmatprep.subr.bf16.mxu0 0
        %494 = vmatpush1.bf16.msra.mxu0 0
        %495 = vmatprep.subr.bf16.mxu0 0
        %496 = vmatpush1.bf16.msra.mxu0 0
        %497 = vmatprep.subr.bf16.mxu0 0
        %498 = vmatpush1.bf16.msra.mxu0 0
        %499 = vmatprep.mubr.bf16.mxu0 0
        %500 = vmatmul.mubr.bf16.gmra.mrb[0].mxu0 %v407
        %v501 = vpop.f32.mrb[0].mxu0
        %v502 = vadd.f32 0.0, %v501
        %v503 = vpop.f32.mrb[0].mxu0
        %v504 = vpop.f32.mrb[0].mxu0
        %v505 = vadd.f32 0.0, %v504
        %v506 = vpop.f32.mrb[0].mxu0
        %507 = vdwg.mxu0
        %v508 = vpack.c.bf16 %v505, %v502
        %v509 = vld [vmem:[#allocation10] sm:$0xf]
        %v510 = vld [vmem:[#allocation10 + $0x4] sm:$0xf]
        %v511 = vld [vmem:[#allocation10 + $0x8] sm:$0xf]
        %v512 = vld [vmem:[#allocation10 + $0xc] sm:$0xf]
        %v517 = vunpack.c.l.b16 %v509
        %v518 = vunpack.c.l.b16 %v510
        %v519 = vunpack.c.l.b16 %v511
        %v520 = vunpack.c.l.b16 %v512
        %v521 = vpack.c.b16 %v518, %v517
        %v522 = vpack.c.b16 %v520, %v519
        %525 = vmatprep.subr.bf16.mxu0 0
        %526 = vmatpush1.bf16.msra.mxu0 %v521
        %527 = vmatprep.subr.bf16.mxu0 0
        %528 = vmatpush1.bf16.msra.mxu0 %v522
        %529 = vmatprep.subr.bf16.mxu0 0
        %530 = vmatpush1.bf16.msra.mxu0 0
        %531 = vmatprep.subr.bf16.mxu0 0
        %532 = vmatpush1.bf16.msra.mxu0 0
        %533 = vmatprep.subr.bf16.mxu0 0
        %534 = vmatpush1.bf16.msra.mxu0 0
        %535 = vmatprep.subr.bf16.mxu0 0
        %536 = vmatpush1.bf16.msra.mxu0 0
        %537 = vmatprep.subr.bf16.mxu0 0
        %538 = vmatpush1.bf16.msra.mxu0 0
        %539 = vmatprep.subr.bf16.mxu0 0
        %540 = vmatpush1.bf16.msra.mxu0 0
        %541 = vmatprep.subr.bf16.mxu0 0
        %542 = vmatpush1.bf16.msra.mxu0 0
        %543 = vmatprep.subr.bf16.mxu0 0
        %544 = vmatpush1.bf16.msra.mxu0 0
        %545 = vmatprep.subr.bf16.mxu0 0
        %546 = vmatpush1.bf16.msra.mxu0 0
        %547 = vmatprep.subr.bf16.mxu0 0
        %548 = vmatpush1.bf16.msra.mxu0 0
        %549 = vmatprep.subr.bf16.mxu0 0
        %550 = vmatpush1.bf16.msra.mxu0 0
        %551 = vmatprep.subr.bf16.mxu0 0
        %552 = vmatpush1.bf16.msra.mxu0 0
        %553 = vmatprep.subr.bf16.mxu0 0
        %554 = vmatpush1.bf16.msra.mxu0 0
        %555 = vmatprep.subr.bf16.mxu0 0
        %556 = vmatpush1.bf16.msra.mxu0 0
        %557 = vmatprep.mubr.bf16.mxu0 0
        %558 = vmatmul.mubr.bf16.gmra.mrb[0].mxu0 %v407
        %v559 = vpop.f32.mrb[0].mxu0
        %v560 = vadd.f32 0.0, %v559
        %v561 = vpop.f32.mrb[0].mxu0
        %v562 = vpop.f32.mrb[0].mxu0
        %v563 = vadd.f32 0.0, %v562
        %v564 = vpop.f32.mrb[0].mxu0
        %565 = vdwg.mxu0
        %v566 = vpack.c.bf16 %v563, %v560
        %vm567 = vcmask 64512
        %v569 = vsel %vm567, %v450, 0
        %v572 = vsel %vm567, %v508, 0
        %574 = vmatprep.subr.bf16.mxu0 0
        %575 = vmatpush1.bf16.xpose.msra.mxu0 %v572
        %576 = vmatprep.subr.bf16.mxu0 0
        %577 = vmatpush1.bf16.xpose.msra.mxu0 0
        %578 = vmatprep.subr.bf16.mxu0 0
        %579 = vmatpush1.bf16.xpose.msra.mxu0 0
        %580 = vmatprep.subr.bf16.mxu0 0
        %581 = vmatpush1.bf16.xpose.msra.mxu0 0
        %582 = vmatprep.subr.bf16.mxu0 0
        %583 = vmatpush1.bf16.xpose.msra.mxu0 0
        %584 = vmatprep.subr.bf16.mxu0 0
        %585 = vmatpush1.bf16.xpose.msra.mxu0 0
        %586 = vmatprep.subr.bf16.mxu0 0
        %587 = vmatpush1.bf16.xpose.msra.mxu0 0
        %588 = vmatprep.subr.bf16.mxu0 0
        %589 = vmatpush1.bf16.xpose.msra.mxu0 0
        %590 = vmatprep.subr.bf16.mxu0 0
        %591 = vmatpush1.bf16.xpose.msra.mxu0 0
        %592 = vmatprep.subr.bf16.mxu0 0
        %593 = vmatpush1.bf16.xpose.msra.mxu0 0
        %594 = vmatprep.subr.bf16.mxu0 0
        %595 = vmatpush1.bf16.xpose.msra.mxu0 0
        %596 = vmatprep.subr.bf16.mxu0 0
        %597 = vmatpush1.bf16.xpose.msra.mxu0 0
        %598 = vmatprep.subr.bf16.mxu0 0
        %599 = vmatpush1.bf16.xpose.msra.mxu0 0
        %600 = vmatprep.subr.bf16.mxu0 0
        %601 = vmatpush1.bf16.xpose.msra.mxu0 0
        %602 = vmatprep.subr.bf16.mxu0 0
        %603 = vmatpush1.bf16.xpose.msra.mxu0 0
        %604 = vmatprep.subr.bf16.mxu0 0
        %605 = vmatpush1.bf16.xpose.msra.mxu0 0
        %606 = vmatprep.mubr.bf16.mxu0 0
        %607 = vmatmul.mubr.bf16.gmra.mrb[0].mxu0 %v569
        %v608 = vpop.f32.mrb[0].mxu0
        %v609 = vadd.f32 0.0, %v608
        %v610 = vpop.f32.mrb[0].mxu0
        %v611 = vpop.f32.mrb[0].mxu0
        %v612 = vpop.f32.mrb[0].mxu0
        %613 = vdwg.mxu0
        %v614 = vsel %vm567, %v609, -inf
        %615 = vmax.xlane.f32.xlu0 %v614
        %v616 = vpop.xlane.xlu0 %615
        %v617 = vsub.f32 %v609, %v616
        %v618 = vmul.f32 %v617, 1.442695
        %v619 = vpow.pop %v618
        %v620 = vsel %vm567, %v619, 0.0
        %621 = vadd.xlane.f32.xlu0 %v620
        %v622 = vpop.xlane.xlu0 %621
        %v623 = vrcp.pop %v622
        %v624 = vmul.f32 %v619, %v623
        %v625 = vpack.c.bf16 %v624, %v624
        %v627 = vsel %vm567, %v625, 0
        %vm629 = vcmask 1043456
        %v631 = vsel %vm629, %v566, 0
        %633 = vmatprep.subr.bf16.mxu0 0
        %634 = vmatpush1.bf16.msra.mxu0 %v631
        %635 = vmatprep.subr.bf16.mxu0 0
        %636 = vmatpush1.bf16.msra.mxu0 0
        %637 = vmatprep.subr.bf16.mxu0 0
        %638 = vmatpush1.bf16.msra.mxu0 0
        %639 = vmatprep.subr.bf16.mxu0 0
        %640 = vmatpush1.bf16.msra.mxu0 0
        %641 = vmatprep.subr.bf16.mxu0 0
        %642 = vmatpush1.bf16.msra.mxu0 0
        %643 = vmatprep.subr.bf16.mxu0 0
        %644 = vmatpush1.bf16.msra.mxu0 0
        %645 = vmatprep.subr.bf16.mxu0 0
        %646 = vmatpush1.bf16.msra.mxu0 0
        %647 = vmatprep.subr.bf16.mxu0 0
        %648 = vmatpush1.bf16.msra.mxu0 0
        %649 = vmatprep.subr.bf16.mxu0 0
        %650 = vmatpush1.bf16.msra.mxu0 0
        %651 = vmatprep.subr.bf16.mxu0 0
        %652 = vmatpush1.bf16.msra.mxu0 0
        %653 = vmatprep.subr.bf16.mxu0 0
        %654 = vmatpush1.bf16.msra.mxu0 0
        %655 = vmatprep.subr.bf16.mxu0 0
        %656 = vmatpush1.bf16.msra.mxu0 0
        %657 = vmatprep.subr.bf16.mxu0 0
        %658 = vmatpush1.bf16.msra.mxu0 0
        %659 = vmatprep.subr.bf16.mxu0 0
        %660 = vmatpush1.bf16.msra.mxu0 0
        %661 = vmatprep.subr.bf16.mxu0 0
        %662 = vmatpush1.bf16.msra.mxu0 0
        %663 = vmatprep.subr.bf16.mxu0 0
        %664 = vmatpush1.bf16.msra.mxu0 0
        %665 = vmatprep.mubr.bf16.mxu0 0
        %666 = vmatmul.mubr.bf16.gmra.mrb[0].mxu0 %v627
        %v667 = vpop.f32.mrb[0].mxu0
        %v668 = vadd.f32 0.0, %v667
        %v669 = vpop.f32.mrb[0].mxu0
        %v670 = vpop.f32.mrb[0].mxu0
        %v671 = vpop.f32.mrb[0].mxu0
        %672 = vdwg.mxu0
        %v673 = vpack.c.bf16 %v668, %v668
        %vm674 = vcmask 60416
        %675 = vst.msk [vmem:[#allocation3] sm:$0xf] %vm674, %v673
        %677 = vrot.lane.b32.xlu0 %v450, 120
        %v678 = vpop.permute.xlu0 %677
        %680 = vrot.lane.b32.xlu0 %v508, 120
        %v681 = vpop.permute.xlu0 %680
        %v683 = vsel %vm567, %v678, 0
        %v686 = vsel %vm567, %v681, 0
        %688 = vmatprep.subr.bf16.mxu0 0
        %689 = vmatpush1.bf16.xpose.msra.mxu0 %v686
        %690 = vmatprep.subr.bf16.mxu0 0
        %691 = vmatpush1.bf16.xpose.msra.mxu0 0
        %692 = vmatprep.subr.bf16.mxu0 0
        %693 = vmatpush1.bf16.xpose.msra.mxu0 0
        %694 = vmatprep.subr.bf16.mxu0 0
        %695 = vmatpush1.bf16.xpose.msra.mxu0 0
        %696 = vmatprep.subr.bf16.mxu0 0
        %697 = vmatpush1.bf16.xpose.msra.mxu0 0
        %698 = vmatprep.subr.bf16.mxu0 0
        %699 = vmatpush1.bf16.xpose.msra.mxu0 0
        %700 = vmatprep.subr.bf16.mxu0 0
        %701 = vmatpush1.bf16.xpose.msra.mxu0 0
        %702 = vmatprep.subr.bf16.mxu0 0
        %703 = vmatpush1.bf16.xpose.msra.mxu0 0
        %704 = vmatprep.subr.bf16.mxu0 0
        %705 = vmatpush1.bf16.xpose.msra.mxu0 0
        %706 = vmatprep.subr.bf16.mxu0 0
        %707 = vmatpush1.bf16.xpose.msra.mxu0 0
        %708 = vmatprep.subr.bf16.mxu0 0
        %709 = vmatpush1.bf16.xpose.msra.mxu0 0
        %710 = vmatprep.subr.bf16.mxu0 0
        %711 = vmatpush1.bf16.xpose.msra.mxu0 0
        %712 = vmatprep.subr.bf16.mxu0 0
        %713 = vmatpush1.bf16.xpose.msra.mxu0 0
        %714 = vmatprep.subr.bf16.mxu0 0
        %715 = vmatpush1.bf16.xpose.msra.mxu0 0
        %716 = vmatprep.subr.bf16.mxu0 0
        %717 = vmatpush1.bf16.xpose.msra.mxu0 0
        %718 = vmatprep.subr.bf16.mxu0 0
        %719 = vmatpush1.bf16.xpose.msra.mxu0 0
        %720 = vmatprep.mubr.bf16.mxu0 0
        %721 = vmatmul.mubr.bf16.gmra.mrb[0].mxu0 %v683
        %v722 = vpop.f32.mrb[0].mxu0
        %v723 = vadd.f32 0.0, %v722
        %v724 = vpop.f32.mrb[0].mxu0
        %v725 = vpop.f32.mrb[0].mxu0
        %v726 = vpop.f32.mrb[0].mxu0
        %727 = vdwg.mxu0
        %v728 = vsel %vm567, %v723, -inf
        %729 = vmax.xlane.f32.xlu0 %v728
        %v730 = vpop.xlane.xlu0 %729
        %v731 = vsub.f32 %v723, %v730
        %v732 = vmul.f32 %v731, 1.442695
        %v733 = vpow.pop %v732
        %v734 = vsel %vm567, %v733, 0.0
        %735 = vadd.xlane.f32.xlu0 %v734
        %v736 = vpop.xlane.xlu0 %735
        %v737 = vrcp.pop %v736
        %v738 = vmul.f32 %v733, %v737
        %v739 = vpack.c.bf16 %v738, %v738
        %741 = vrot.lane.b32.xlu0 %v566, 120
        %v742 = vpop.permute.xlu0 %741
        %v744 = vsel %vm567, %v739, 0
        %v747 = vsel %vm629, %v742, 0
        %749 = vmatprep.subr.bf16.mxu0 0
        %750 = vmatpush1.bf16.msra.mxu0 %v747
        %751 = vmatprep.subr.bf16.mxu0 0
        %752 = vmatpush1.bf16.msra.mxu0 0
        %753 = vmatprep.subr.bf16.mxu0 0
        %754 = vmatpush1.bf16.msra.mxu0 0
        %755 = vmatprep.subr.bf16.mxu0 0
        %756 = vmatpush1.bf16.msra.mxu0 0
        %757 = vmatprep.subr.bf16.mxu0 0
        %758 = vmatpush1.bf16.msra.mxu0 0
        %759 = vmatprep.subr.bf16.mxu0 0
        %760 = vmatpush1.bf16.msra.mxu0 0
        %761 = vmatprep.subr.bf16.mxu0 0
        %762 = vmatpush1.bf16.msra.mxu0 0
        %763 = vmatprep.subr.bf16.mxu0 0
        %764 = vmatpush1.bf16.msra.mxu0 0
        %765 = vmatprep.subr.bf16.mxu0 0
        %766 = vmatpush1.bf16.msra.mxu0 0
        %767 = vmatprep.subr.bf16.mxu0 0
        %768 = vmatpush1.bf16.msra.mxu0 0
        %769 = vmatprep.subr.bf16.mxu0 0
        %770 = vmatpush1.bf16.msra.mxu0 0
        %771 = vmatprep.subr.bf16.mxu0 0
        %772 = vmatpush1.bf16.msra.mxu0 0
        %773 = vmatprep.subr.bf16.mxu0 0
        %774 = vmatpush1.bf16.msra.mxu0 0
        %775 = vmatprep.subr.bf16.mxu0 0
        %776 = vmatpush1.bf16.msra.mxu0 0
        %777 = vmatprep.subr.bf16.mxu0 0
        %778 = vmatpush1.bf16.msra.mxu0 0
        %779 = vmatprep.subr.bf16.mxu0 0
        %780 = vmatpush1.bf16.msra.mxu0 0
        %781 = vmatprep.mubr.bf16.mxu0 0
        %782 = vmatmul.mubr.bf16.gmra.mrb[0].mxu0 %v744
        %v783 = vpop.f32.mrb[0].mxu0
        %v784 = vadd.f32 0.0, %v783
        %v785 = vpop.f32.mrb[0].mxu0
        %v786 = vpop.f32.mrb[0].mxu0
        %v787 = vpop.f32.mrb[0].mxu0
        %788 = vdwg.mxu0
        %v789 = vpack.c.bf16 %v784, %v784
        %791 = vrot.lane.b32.xlu0 %v789, 8
        %v792 = vpop.permute.xlu0 %791
        %vm794 = vcmask 126016
        %795 = vst.msk [vmem:[#allocation3] sm:$0xf] %vm794, %v792
        %796 = vrot.lane.b32.xlu0 %v450, 112
        %v797 = vpop.permute.xlu0 %796
        %798 = vrot.lane.b32.xlu0 %v508, 112
        %v799 = vpop.permute.xlu0 %798
        %v801 = vsel %vm567, %v797, 0
        %v804 = vsel %vm567, %v799, 0
        %806 = vmatprep.subr.bf16.mxu0 0
        %807 = vmatpush1.bf16.xpose.msra.mxu0 %v804
        %808 = vmatprep.subr.bf16.mxu0 0
        %809 = vmatpush1.bf16.xpose.msra.mxu0 0
        %810 = vmatprep.subr.bf16.mxu0 0
        %811 = vmatpush1.bf16.xpose.msra.mxu0 0
        %812 = vmatprep.subr.bf16.mxu0 0
        %813 = vmatpush1.bf16.xpose.msra.mxu0 0
        %814 = vmatprep.subr.bf16.mxu0 0
        %815 = vmatpush1.bf16.xpose.msra.mxu0 0
        %816 = vmatprep.subr.bf16.mxu0 0
        %817 = vmatpush1.bf16.xpose.msra.mxu0 0
        %818 = vmatprep.subr.bf16.mxu0 0
        %819 = vmatpush1.bf16.xpose.msra.mxu0 0
        %820 = vmatprep.subr.bf16.mxu0 0
        %821 = vmatpush1.bf16.xpose.msra.mxu0 0
        %822 = vmatprep.subr.bf16.mxu0 0
        %823 = vmatpush1.bf16.xpose.msra.mxu0 0
        %824 = vmatprep.subr.bf16.mxu0 0
        %825 = vmatpush1.bf16.xpose.msra.mxu0 0
        %826 = vmatprep.subr.bf16.mxu0 0
        %827 = vmatpush1.bf16.xpose.msra.mxu0 0
        %828 = vmatprep.subr.bf16.mxu0 0
        %829 = vmatpush1.bf16.xpose.msra.mxu0 0
        %830 = vmatprep.subr.bf16.mxu0 0
        %831 = vmatpush1.bf16.xpose.msra.mxu0 0
        %832 = vmatprep.subr.bf16.mxu0 0
        %833 = vmatpush1.bf16.xpose.msra.mxu0 0
        %834 = vmatprep.subr.bf16.mxu0 0
        %835 = vmatpush1.bf16.xpose.msra.mxu0 0
        %836 = vmatprep.subr.bf16.mxu0 0
        %837 = vmatpush1.bf16.xpose.msra.mxu0 0
        %838 = vmatprep.mubr.bf16.mxu0 0
        %839 = vmatmul.mubr.bf16.gmra.mrb[0].mxu0 %v801
        %v840 = vpop.f32.mrb[0].mxu0
        %v841 = vadd.f32 0.0, %v840
        %v842 = vpop.f32.mrb[0].mxu0
        %v843 = vpop.f32.mrb[0].mxu0
        %v844 = vpop.f32.mrb[0].mxu0
        %845 = vdwg.mxu0
        %v846 = vsel %vm567, %v841, -inf
        %847 = vmax.xlane.f32.xlu0 %v846
        %v848 = vpop.xlane.xlu0 %847
        %v849 = vsub.f32 %v841, %v848
        %v850 = vmul.f32 %v849, 1.442695
        %v851 = vpow.pop %v850
        %v852 = vsel %vm567, %v851, 0.0
        %853 = vadd.xlane.f32.xlu0 %v852
        %v854 = vpop.xlane.xlu0 %853
        %v855 = vrcp.pop %v854
        %v856 = vmul.f32 %v851, %v855
        %v857 = vpack.c.bf16 %v856, %v856
        %858 = vrot.lane.b32.xlu0 %v566, 112
        %v859 = vpop.permute.xlu0 %858
        %v861 = vsel %vm567, %v857, 0
        %v864 = vsel %vm629, %v859, 0
        %866 = vmatprep.subr.bf16.mxu0 0
        %867 = vmatpush1.bf16.msra.mxu0 %v864
        %868 = vmatprep.subr.bf16.mxu0 0
        %869 = vmatpush1.bf16.msra.mxu0 0
        %870 = vmatprep.subr.bf16.mxu0 0
        %871 = vmatpush1.bf16.msra.mxu0 0
        %872 = vmatprep.subr.bf16.mxu0 0
        %873 = vmatpush1.bf16.msra.mxu0 0
        %874 = vmatprep.subr.bf16.mxu0 0
        %875 = vmatpush1.bf16.msra.mxu0 0
        %876 = vmatprep.subr.bf16.mxu0 0
        %877 = vmatpush1.bf16.msra.mxu0 0
        %878 = vmatprep.subr.bf16.mxu0 0
        %879 = vmatpush1.bf16.msra.mxu0 0
        %880 = vmatprep.subr.bf16.mxu0 0
        %881 = vmatpush1.bf16.msra.mxu0 0
        %882 = vmatprep.subr.bf16.mxu0 0
        %883 = vmatpush1.bf16.msra.mxu0 0
        %884 = vmatprep.subr.bf16.mxu0 0
        %885 = vmatpush1.bf16.msra.mxu0 0
        %886 = vmatprep.subr.bf16.mxu0 0
        %887 = vmatpush1.bf16.msra.mxu0 0
        %888 = vmatprep.subr.bf16.mxu0 0
        %889 = vmatpush1.bf16.msra.mxu0 0
        %890 = vmatprep.subr.bf16.mxu0 0
        %891 = vmatpush1.bf16.msra.mxu0 0
        %892 = vmatprep.subr.bf16.mxu0 0
        %893 = vmatpush1.bf16.msra.mxu0 0
        %894 = vmatprep.subr.bf16.mxu0 0
        %895 = vmatpush1.bf16.msra.mxu0 0
        %896 = vmatprep.subr.bf16.mxu0 0
        %897 = vmatpush1.bf16.msra.mxu0 0
        %898 = vmatprep.mubr.bf16.mxu0 0
        %899 = vmatmul.mubr.bf16.gmra.mrb[0].mxu0 %v861
        %v900 = vpop.f32.mrb[0].mxu0
        %v901 = vadd.f32 0.0, %v900
        %v902 = vpop.f32.mrb[0].mxu0
        %v903 = vpop.f32.mrb[0].mxu0
        %v904 = vpop.f32.mrb[0].mxu0
        %905 = vdwg.mxu0
        %v906 = vpack.c.bf16 %v901, %v901
        %908 = vrot.lane.b32.xlu0 %v906, 16
        %v909 = vpop.permute.xlu0 %908
        %vm911 = vcmask 191616
        %912 = vst.msk [vmem:[#allocation3] sm:$0xf] %vm911, %v909
        %913 = vrot.lane.b32.xlu0 %v450, 104
        %v914 = vpop.permute.xlu0 %913
        %915 = vrot.lane.b32.xlu0 %v508, 104
        %v916 = vpop.permute.xlu0 %915
        %v918 = vsel %vm567, %v914, 0
        %v921 = vsel %vm567, %v916, 0
        %923 = vmatprep.subr.bf16.mxu0 0
        %924 = vmatpush1.bf16.xpose.msra.mxu0 %v921
        %925 = vmatprep.subr.bf16.mxu0 0
        %926 = vmatpush1.bf16.xpose.msra.mxu0 0
        %927 = vmatprep.subr.bf16.mxu0 0
        %928 = vmatpush1.bf16.xpose.msra.mxu0 0
        %929 = vmatprep.subr.bf16.mxu0 0
        %930 = vmatpush1.bf16.xpose.msra.mxu0 0
        %931 = vmatprep.subr.bf16.mxu0 0
        %932 = vmatpush1.bf16.xpose.msra.mxu0 0
        %933 = vmatprep.subr.bf16.mxu0 0
        %934 = vmatpush1.bf16.xpose.msra.mxu0 0
        %935 = vmatprep.subr.bf16.mxu0 0
        %936 = vmatpush1.bf16.xpose.msra.mxu0 0
        %937 = vmatprep.subr.bf16.mxu0 0
        %938 = vmatpush1.bf16.xpose.msra.mxu0 0
        %939 = vmatprep.subr.bf16.mxu0 0
        %940 = vmatpush1.bf16.xpose.msra.mxu0 0
        %941 = vmatprep.subr.bf16.mxu0 0
        %942 = vmatpush1.bf16.xpose.msra.mxu0 0
        %943 = vmatprep.subr.bf16.mxu0 0
        %944 = vmatpush1.bf16.xpose.msra.mxu0 0
        %945 = vmatprep.subr.bf16.mxu0 0
        %946 = vmatpush1.bf16.xpose.msra.mxu0 0
        %947 = vmatprep.subr.bf16.mxu0 0
        %948 = vmatpush1.bf16.xpose.msra.mxu0 0
        %949 = vmatprep.subr.bf16.mxu0 0
        %950 = vmatpush1.bf16.xpose.msra.mxu0 0
        %951 = vmatprep.subr.bf16.mxu0 0
        %952 = vmatpush1.bf16.xpose.msra.mxu0 0
        %953 = vmatprep.subr.bf16.mxu0 0
        %954 = vmatpush1.bf16.xpose.msra.mxu0 0
        %955 = vmatprep.mubr.bf16.mxu0 0
        %956 = vmatmul.mubr.bf16.gmra.mrb[0].mxu0 %v918
        %v957 = vpop.f32.mrb[0].mxu0
        %v958 = vadd.f32 0.0, %v957
        %v959 = vpop.f32.mrb[0].mxu0
        %v960 = vpop.f32.mrb[0].mxu0
        %v961 = vpop.f32.mrb[0].mxu0
        %962 = vdwg.mxu0
        %v963 = vsel %vm567, %v958, -inf
        %964 = vmax.xlane.f32.xlu0 %v963
        %v965 = vpop.xlane.xlu0 %964
        %v966 = vsub.f32 %v958, %v965
        %v967 = vmul.f32 %v966, 1.442695
        %v968 = vpow.pop %v967
        %v969 = vsel %vm567, %v968, 0.0
        %970 = vadd.xlane.f32.xlu0 %v969
        %v971 = vpop.xlane.xlu0 %970
        %v972 = vrcp.pop %v971
        %v973 = vmul.f32 %v968, %v972
        %v974 = vpack.c.bf16 %v973, %v973
        %975 = vrot.lane.b32.xlu0 %v566, 104
        %v976 = vpop.permute.xlu0 %975
        %v978 = vsel %vm567, %v974, 0
        %v981 = vsel %vm629, %v976, 0
        %983 = vmatprep.subr.bf16.mxu0 0
        %984 = vmatpush1.bf16.msra.mxu0 %v981
        %985 = vmatprep.subr.bf16.mxu0 0
        %986 = vmatpush1.bf16.msra.mxu0 0
        %987 = vmatprep.subr.bf16.mxu0 0
        %988 = vmatpush1.bf16.msra.mxu0 0
        %989 = vmatprep.subr.bf16.mxu0 0
        %990 = vmatpush1.bf16.msra.mxu0 0
        %991 = vmatprep.subr.bf16.mxu0 0
        %992 = vmatpush1.bf16.msra.mxu0 0
        %993 = vmatprep.subr.bf16.mxu0 0
        %994 = vmatpush1.bf16.msra.mxu0 0
        %995 = vmatprep.subr.bf16.mxu0 0
        %996 = vmatpush1.bf16.msra.mxu0 0
        %997 = vmatprep.subr.bf16.mxu0 0
        %998 = vmatpush1.bf16.msra.mxu0 0
        %999 = vmatprep.subr.bf16.mxu0 0
        %1000 = vmatpush1.bf16.msra.mxu0 0
        %1001 = vmatprep.subr.bf16.mxu0 0
        %1002 = vmatpush1.bf16.msra.mxu0 0
        %1003 = vmatprep.subr.bf16.mxu0 0
        %1004 = vmatpush1.bf16.msra.mxu0 0
        %1005 = vmatprep.subr.bf16.mxu0 0
        %1006 = vmatpush1.bf16.msra.mxu0 0
        %1007 = vmatprep.subr.bf16.mxu0 0
        %1008 = vmatpush1.bf16.msra.mxu0 0
        %1009 = vmatprep.subr.bf16.mxu0 0
        %1010 = vmatpush1.bf16.msra.mxu0 0
        %1011 = vmatprep.subr.bf16.mxu0 0
        %1012 = vmatpush1.bf16.msra.mxu0 0
        %1013 = vmatprep.subr.bf16.mxu0 0
        %1014 = vmatpush1.bf16.msra.mxu0 0
        %1015 = vmatprep.mubr.bf16.mxu0 0
        %1016 = vmatmul.mubr.bf16.gmra.mrb[0].mxu0 %v978
        %v1017 = vpop.f32.mrb[0].mxu0
        %v1018 = vadd.f32 0.0, %v1017
        %v1019 = vpop.f32.mrb[0].mxu0
        %v1020 = vpop.f32.mrb[0].mxu0
        %v1021 = vpop.f32.mrb[0].mxu0
        %1022 = vdwg.mxu0
        %v1023 = vpack.c.bf16 %v1018, %v1018
        %1025 = vrot.lane.b32.xlu0 %v1023, 24
        %v1026 = vpop.permute.xlu0 %1025
        %vm1028 = vcmask 257216
        %1029 = vst.msk [vmem:[#allocation3] sm:$0xf] %vm1028, %v1026
        %v1030 = vrot.slane %v450, 4
        %v1031 = vrot.slane %v508, 4
        %v1033 = vsel %vm567, %v1030, 0
        %v1036 = vsel %vm567, %v1031, 0
        %1038 = vmatprep.subr.bf16.mxu0 0
        %1039 = vmatpush1.bf16.xpose.msra.mxu0 %v1036
        %1040 = vmatprep.subr.bf16.mxu0 0
        %1041 = vmatpush1.bf16.xpose.msra.mxu0 0
        %1042 = vmatprep.subr.bf16.mxu0 0
        %1043 = vmatpush1.bf16.xpose.msra.mxu0 0
        %1044 = vmatprep.subr.bf16.mxu0 0
        %1045 = vmatpush1.bf16.xpose.msra.mxu0 0
        %1046 = vmatprep.subr.bf16.mxu0 0
        %1047 = vmatpush1.bf16.xpose.msra.mxu0 0
        %1048 = vmatprep.subr.bf16.mxu0 0
        %1049 = vmatpush1.bf16.xpose.msra.mxu0 0
        %1050 = vmatprep.subr.bf16.mxu0 0
        %1051 = vmatpush1.bf16.xpose.msra.mxu0 0
        %1052 = vmatprep.subr.bf16.mxu0 0
        %1053 = vmatpush1.bf16.xpose.msra.mxu0 0
        %1054 = vmatprep.subr.bf16.mxu0 0
        %1055 = vmatpush1.bf16.xpose.msra.mxu0 0
        %1056 = vmatprep.subr.bf16.mxu0 0
        %1057 = vmatpush1.bf16.xpose.msra.mxu0 0
        %1058 = vmatprep.subr.bf16.mxu0 0
        %1059 = vmatpush1.bf16.xpose.msra.mxu0 0
        %1060 = vmatprep.subr.bf16.mxu0 0
        %1061 = vmatpush1.bf16.xpose.msra.mxu0 0
        %1062 = vmatprep.subr.bf16.mxu0 0
        %1063 = vmatpush1.bf16.xpose.msra.mxu0 0
        %1064 = vmatprep.subr.bf16.mxu0 0
        %1065 = vmatpush1.bf16.xpose.msra.mxu0 0
        %1066 = vmatprep.subr.bf16.mxu0 0
        %1067 = vmatpush1.bf16.xpose.msra.mxu0 0
        %1068 = vmatprep.subr.bf16.mxu0 0
        %1069 = vmatpush1.bf16.xpose.msra.mxu0 0
        %1070 = vmatprep.mubr.bf16.mxu0 0
        %1071 = vmatmul.mubr.bf16.gmra.mrb[0].mxu0 %v1033
        %v1072 = vpop.f32.mrb[0].mxu0
        %v1073 = vadd.f32 0.0, %v1072
        %v1074 = vpop.f32.mrb[0].mxu0
        %v1075 = vpop.f32.mrb[0].mxu0
        %v1076 = vpop.f32.mrb[0].mxu0
        %1077 = vdwg.mxu0
        %v1078 = vsel %vm567, %v1073, -inf
        %1079 = vmax.xlane.f32.xlu0 %v1078
        %v1080 = vpop.xlane.xlu0 %1079
        %v1081 = vsub.f32 %v1073, %v1080
        %v1082 = vmul.f32 %v1081, 1.442695
        %v1083 = vpow.pop %v1082
        %v1084 = vsel %vm567, %v1083, 0.0
        %1085 = vadd.xlane.f32.xlu0 %v1084
        %v1086 = vpop.xlane.xlu0 %1085
        %v1087 = vrcp.pop %v1086
        %v1088 = vmul.f32 %v1083, %v1087
        %v1089 = vpack.c.bf16 %v1088, %v1088
        %v1090 = vrot.slane %v566, 4
        %v1092 = vsel %vm567, %v1089, 0
        %v1095 = vsel %vm629, %v1090, 0
        %1097 = vmatprep.subr.bf16.mxu0 0
        %1098 = vmatpush1.bf16.msra.mxu0 %v1095
        %1099 = vmatprep.subr.bf16.mxu0 0
        %1100 = vmatpush1.bf16.msra.mxu0 0
        %1101 = vmatprep.subr.bf16.mxu0 0
        %1102 = vmatpush1.bf16.msra.mxu0 0
        %1103 = vmatprep.subr.bf16.mxu0 0
        %1104 = vmatpush1.bf16.msra.mxu0 0
        %1105 = vmatprep.subr.bf16.mxu0 0
        %1106 = vmatpush1.bf16.msra.mxu0 0
        %1107 = vmatprep.subr.bf16.mxu0 0
        %1108 = vmatpush1.bf16.msra.mxu0 0
        %1109 = vmatprep.subr.bf16.mxu0 0
        %1110 = vmatpush1.bf16.msra.mxu0 0
        %1111 = vmatprep.subr.bf16.mxu0 0
        %1112 = vmatpush1.bf16.msra.mxu0 0
        %1113 = vmatprep.subr.bf16.mxu0 0
        %1114 = vmatpush1.bf16.msra.mxu0 0
        %1115 = vmatprep.subr.bf16.mxu0 0
        %1116 = vmatpush1.bf16.msra.mxu0 0
        %1117 = vmatprep.subr.bf16.mxu0 0
        %1118 = vmatpush1.bf16.msra.mxu0 0
        %1119 = vmatprep.subr.bf16.mxu0 0
        %1120 = vmatpush1.bf16.msra.mxu0 0
        %1121 = vmatprep.subr.bf16.mxu0 0
        %1122 = vmatpush1.bf16.msra.mxu0 0
        %1123 = vmatprep.subr.bf16.mxu0 0
        %1124 = vmatpush1.bf16.msra.mxu0 0
        %1125 = vmatprep.subr.bf16.mxu0 0
        %1126 = vmatpush1.bf16.msra.mxu0 0
        %1127 = vmatprep.subr.bf16.mxu0 0
        %1128 = vmatpush1.bf16.msra.mxu0 0
        %1129 = vmatprep.mubr.bf16.mxu0 0
        %1130 = vmatmul.mubr.bf16.gmra.mrb[0].mxu0 %v1092
        %v1131 = vpop.f32.mrb[0].mxu0
        %v1132 = vadd.f32 0.0, %v1131
        %v1133 = vpop.f32.mrb[0].mxu0
        %v1134 = vpop.f32.mrb[0].mxu0
        %v1135 = vpop.f32.mrb[0].mxu0
        %1136 = vdwg.mxu0
        %v1137 = vpack.c.bf16 %v1132, %v1132
        %v1139 = vrot.slane %v1137, 4
        %vm1141 = vcmask 64516
        %1142 = vst.msk [vmem:[#allocation3] sm:$0xf0] %vm1141, %v1139
        %1143 = vrot.lane.b32.xlu0 %v1030, 120
        %v1144 = vpop.permute.xlu0 %1143
        %1145 = vrot.lane.b32.xlu0 %v1031, 120
        %v1146 = vpop.permute.xlu0 %1145
        %v1148 = vsel %vm567, %v1144, 0
        %v1151 = vsel %vm567, %v1146, 0
        %1153 = vmatprep.subr.bf16.mxu0 0
        %1154 = vmatpush1.bf16.xpose.msra.mxu0 %v1151
        %1155 = vmatprep.subr.bf16.mxu0 0
        %1156 = vmatpush1.bf16.xpose.msra.mxu0 0
        %1157 = vmatprep.subr.bf16.mxu0 0
        %1158 = vmatpush1.bf16.xpose.msra.mxu0 0
        %1159 = vmatprep.subr.bf16.mxu0 0
        %1160 = vmatpush1.bf16.xpose.msra.mxu0 0
        %1161 = vmatprep.subr.bf16.mxu0 0
        %1162 = vmatpush1.bf16.xpose.msra.mxu0 0
        %1163 = vmatprep.subr.bf16.mxu0 0
        %1164 = vmatpush1.bf16.xpose.msra.mxu0 0
        %1165 = vmatprep.subr.bf16.mxu0 0
        %1166 = vmatpush1.bf16.xpose.msra.mxu0 0
        %1167 = vmatprep.subr.bf16.mxu0 0
        %1168 = vmatpush1.bf16.xpose.msra.mxu0 0
        %1169 = vmatprep.subr.bf16.mxu0 0
        %1170 = vmatpush1.bf16.xpose.msra.mxu0 0
        %1171 = vmatprep.subr.bf16.mxu0 0
        %1172 = vmatpush1.bf16.xpose.msra.mxu0 0
        %1173 = vmatprep.subr.bf16.mxu0 0
        %1174 = vmatpush1.bf16.xpose.msra.mxu0 0
        %1175 = vmatprep.subr.bf16.mxu0 0
        %1176 = vmatpush1.bf16.xpose.msra.mxu0 0
        %1177 = vmatprep.subr.bf16.mxu0 0
        %1178 = vmatpush1.bf16.xpose.msra.mxu0 0
        %1179 = vmatprep.subr.bf16.mxu0 0
        %1180 = vmatpush1.bf16.xpose.msra.mxu0 0
        %1181 = vmatprep.subr.bf16.mxu0 0
        %1182 = vmatpush1.bf16.xpose.msra.mxu0 0
        %1183 = vmatprep.subr.bf16.mxu0 0
        %1184 = vmatpush1.bf16.xpose.msra.mxu0 0
        %1185 = vmatprep.mubr.bf16.mxu0 0
        %1186 = vmatmul.mubr.bf16.gmra.mrb[0].mxu0 %v1148
        %v1187 = vpop.f32.mrb[0].mxu0
        %v1188 = vadd.f32 0.0, %v1187
        %v1189 = vpop.f32.mrb[0].mxu0
        %v1190 = vpop.f32.mrb[0].mxu0
        %v1191 = vpop.f32.mrb[0].mxu0
        %1192 = vdwg.mxu0
        %v1193 = vsel %vm567, %v1188, -inf
        %1194 = vmax.xlane.f32.xlu0 %v1193
        %v1195 = vpop.xlane.xlu0 %1194
        %v1196 = vsub.f32 %v1188, %v1195
        %v1197 = vmul.f32 %v1196, 1.442695
        %v1198 = vpow.pop %v1197
        %v1199 = vsel %vm567, %v1198, 0.0
        %1200 = vadd.xlane.f32.xlu0 %v1199
        %v1201 = vpop.xlane.xlu0 %1200
        %v1202 = vrcp.pop %v1201
        %v1203 = vmul.f32 %v1198, %v1202
        %v1204 = vpack.c.bf16 %v1203, %v1203
        %1205 = vrot.lane.b32.xlu0 %v1090, 120
        %v1206 = vpop.permute.xlu0 %1205
        %v1208 = vsel %vm567, %v1204, 0
        %v1211 = vsel %vm629, %v1206, 0
        %1213 = vmatprep.subr.bf16.mxu0 0
        %1214 = vmatpush1.bf16.msra.mxu0 %v1211
        %1215 = vmatprep.subr.bf16.mxu0 0
        %1216 = vmatpush1.bf16.msra.mxu0 0
        %1217 = vmatprep.subr.bf16.mxu0 0
        %1218 = vmatpush1.bf16.msra.mxu0 0
        %1219 = vmatprep.subr.bf16.mxu0 0
        %1220 = vmatpush1.bf16.msra.mxu0 0
        %1221 = vmatprep.subr.bf16.mxu0 0
        %1222 = vmatpush1.bf16.msra.mxu0 0
        %1223 = vmatprep.subr.bf16.mxu0 0
        %1224 = vmatpush1.bf16.msra.mxu0 0
        %1225 = vmatprep.subr.bf16.mxu0 0
        %1226 = vmatpush1.bf16.msra.mxu0 0
        %1227 = vmatprep.subr.bf16.mxu0 0
        %1228 = vmatpush1.bf16.msra.mxu0 0
        %1229 = vmatprep.subr.bf16.mxu0 0
        %1230 = vmatpush1.bf16.msra.mxu0 0
        %1231 = vmatprep.subr.bf16.mxu0 0
        %1232 = vmatpush1.bf16.msra.mxu0 0
        %1233 = vmatprep.subr.bf16.mxu0 0
        %1234 = vmatpush1.bf16.msra.mxu0 0
        %1235 = vmatprep.subr.bf16.mxu0 0
        %1236 = vmatpush1.bf16.msra.mxu0 0
        %1237 = vmatprep.subr.bf16.mxu0 0
        %1238 = vmatpush1.bf16.msra.mxu0 0
        %1239 = vmatprep.subr.bf16.mxu0 0
        %1240 = vmatpush1.bf16.msra.mxu0 0
        %1241 = vmatprep.subr.bf16.mxu0 0
        %1242 = vmatpush1.bf16.msra.mxu0 0
        %1243 = vmatprep.subr.bf16.mxu0 0
        %1244 = vmatpush1.bf16.msra.mxu0 0
        %1245 = vmatprep.mubr.bf16.mxu0 0
        %1246 = vmatmul.mubr.bf16.gmra.mrb[0].mxu0 %v1208
        %v1247 = vpop.f32.mrb[0].mxu0
        %v1248 = vadd.f32 0.0, %v1247
        %v1249 = vpop.f32.mrb[0].mxu0
        %v1250 = vpop.f32.mrb[0].mxu0
        %v1251 = vpop.f32.mrb[0].mxu0
        %1252 = vdwg.mxu0
        %v1253 = vpack.c.bf16 %v1248, %v1248
        %v1255 = vrot.slane %v1253, 4
        %1256 = vrot.lane.b32.xlu0 %v1255, 8
        %v1257 = vpop.permute.xlu0 %1256
        %vm1259 = vcmask 130116
        %1260 = vst.msk [vmem:[#allocation3] sm:$0xf0] %vm1259, %v1257
        %1261 = vrot.lane.b32.xlu0 %v1030, 112
        %v1262 = vpop.permute.xlu0 %1261
        %1263 = vrot.lane.b32.xlu0 %v1031, 112
        %v1264 = vpop.permute.xlu0 %1263
        %v1266 = vsel %vm567, %v1262, 0
        %v1269 = vsel %vm567, %v1264, 0
        %1271 = vmatprep.subr.bf16.mxu0 0
        %1272 = vmatpush1.bf16.xpose.msra.mxu0 %v1269
        %1273 = vmatprep.subr.bf16.mxu0 0
        %1274 = vmatpush1.bf16.xpose.msra.mxu0 0
        %1275 = vmatprep.subr.bf16.mxu0 0
        %1276 = vmatpush1.bf16.xpose.msra.mxu0 0
        %1277 = vmatprep.subr.bf16.mxu0 0
        %1278 = vmatpush1.bf16.xpose.msra.mxu0 0
        %1279 = vmatprep.subr.bf16.mxu0 0
        %1280 = vmatpush1.bf16.xpose.msra.mxu0 0
        %1281 = vmatprep.subr.bf16.mxu0 0
        %1282 = vmatpush1.bf16.xpose.msra.mxu0 0
        %1283 = vmatprep.subr.bf16.mxu0 0
        %1284 = vmatpush1.bf16.xpose.msra.mxu0 0
        %1285 = vmatprep.subr.bf16.mxu0 0
        %1286 = vmatpush1.bf16.xpose.msra.mxu0 0
        %1287 = vmatprep.subr.bf16.mxu0 0
        %1288 = vmatpush1.bf16.xpose.msra.mxu0 0
        %1289 = vmatprep.subr.bf16.mxu0 0
        %1290 = vmatpush1.bf16.xpose.msra.mxu0 0
        %1291 = vmatprep.subr.bf16.mxu0 0
        %1292 = vmatpush1.bf16.xpose.msra.mxu0 0
        %1293 = vmatprep.subr.bf16.mxu0 0
        %1294 = vmatpush1.bf16.xpose.msra.mxu0 0
        %1295 = vmatprep.subr.bf16.mxu0 0
        %1296 = vmatpush1.bf16.xpose.msra.mxu0 0
        %1297 = vmatprep.subr.bf16.mxu0 0
        %1298 = vmatpush1.bf16.xpose.msra.mxu0 0
        %1299 = vmatprep.subr.bf16.mxu0 0
        %1300 = vmatpush1.bf16.xpose.msra.mxu0 0
        %1301 = vmatprep.subr.bf16.mxu0 0
        %1302 = vmatpush1.bf16.xpose.msra.mxu0 0
        %1303 = vmatprep.mubr.bf16.mxu0 0
        %1304 = vmatmul.mubr.bf16.gmra.mrb[0].mxu0 %v1266
        %v1305 = vpop.f32.mrb[0].mxu0
        %v1306 = vadd.f32 0.0, %v1305
        %v1307 = vpop.f32.mrb[0].mxu0
        %v1308 = vpop.f32.mrb[0].mxu0
        %v1309 = vpop.f32.mrb[0].mxu0
        %1310 = vdwg.mxu0
        %v1311 = vsel %vm567, %v1306, -inf
        %1312 = vmax.xlane.f32.xlu0 %v1311
        %v1313 = vpop.xlane.xlu0 %1312
        %v1314 = vsub.f32 %v1306, %v1313
        %v1315 = vmul.f32 %v1314, 1.442695
        %v1316 = vpow.pop %v1315
        %v1317 = vsel %vm567, %v1316, 0.0
        %1318 = vadd.xlane.f32.xlu0 %v1317
        %v1319 = vpop.xlane.xlu0 %1318
        %v1320 = vrcp.pop %v1319
        %v1321 = vmul.f32 %v1316, %v1320
        %v1322 = vpack.c.bf16 %v1321, %v1321
        %1323 = vrot.lane.b32.xlu0 %v1090, 112
        %v1324 = vpop.permute.xlu0 %1323
        %v1326 = vsel %vm567, %v1322, 0
        %v1329 = vsel %vm629, %v1324, 0
        %1331 = vmatprep.subr.bf16.mxu0 0
        %1332 = vmatpush1.bf16.msra.mxu0 %v1329
        %1333 = vmatprep.subr.bf16.mxu0 0
        %1334 = vmatpush1.bf16.msra.mxu0 0
        %1335 = vmatprep.subr.bf16.mxu0 0
        %1336 = vmatpush1.bf16.msra.mxu0 0
        %1337 = vmatprep.subr.bf16.mxu0 0
        %1338 = vmatpush1.bf16.msra.mxu0 0
        %1339 = vmatprep.subr.bf16.mxu0 0
        %1340 = vmatpush1.bf16.msra.mxu0 0
        %1341 = vmatprep.subr.bf16.mxu0 0
        %1342 = vmatpush1.bf16.msra.mxu0 0
        %1343 = vmatprep.subr.bf16.mxu0 0
        %1344 = vmatpush1.bf16.msra.mxu0 0
        %1345 = vmatprep.subr.bf16.mxu0 0
        %1346 = vmatpush1.bf16.msra.mxu0 0
        %1347 = vmatprep.subr.bf16.mxu0 0
        %1348 = vmatpush1.bf16.msra.mxu0 0
        %1349 = vmatprep.subr.bf16.mxu0 0
        %1350 = vmatpush1.bf16.msra.mxu0 0
        %1351 = vmatprep.subr.bf16.mxu0 0
        %1352 = vmatpush1.bf16.msra.mxu0 0
        %1353 = vmatprep.subr.bf16.mxu0 0
        %1354 = vmatpush1.bf16.msra.mxu0 0
        %1355 = vmatprep.subr.bf16.mxu0 0
        %1356 = vmatpush1.bf16.msra.mxu0 0
        %1357 = vmatprep.subr.bf16.mxu0 0
        %1358 = vmatpush1.bf16.msra.mxu0 0
        %1359 = vmatprep.subr.bf16.mxu0 0
        %1360 = vmatpush1.bf16.msra.mxu0 0
        %1361 = vmatprep.subr.bf16.mxu0 0
        %1362 = vmatpush1.bf16.msra.mxu0 0
        %1363 = vmatprep.mubr.bf16.mxu0 0
        %1364 = vmatmul.mubr.bf16.gmra.mrb[0].mxu0 %v1326
        %v1365 = vpop.f32.mrb[0].mxu0
        %v1366 = vadd.f32 0.0, %v1365
        %v1367 = vpop.f32.mrb[0].mxu0
        %v1368 = vpop.f32.mrb[0].mxu0
        %v1369 = vpop.f32.mrb[0].mxu0
        %1370 = vdwg.mxu0
        %v1371 = vpack.c.bf16 %v1366, %v1366
        %v1373 = vrot.slane %v1371, 4
        %1374 = vrot.lane.b32.xlu0 %v1373, 16
        %v1375 = vpop.permute.xlu0 %1374
        %vm1377 = vcmask 195716
        %1378 = vst.msk [vmem:[#allocation3] sm:$0xf0] %vm1377, %v1375
        %1379 = vrot.lane.b32.xlu0 %v1030, 104
        %v1380 = vpop.permute.xlu0 %1379
        %1381 = vrot.lane.b32.xlu0 %v1031, 104
        %v1382 = vpop.permute.xlu0 %1381
        %v1384 = vsel %vm567, %v1380, 0
        %v1387 = vsel %vm567, %v1382, 0
        %1389 = vmatprep.subr.bf16.mxu0 0
        %1390 = vmatpush1.bf16.xpose.msra.mxu0 %v1387
        %1391 = vmatprep.subr.bf16.mxu0 0
        %1392 = vmatpush1.bf16.xpose.msra.mxu0 0
        %1393 = vmatprep.subr.bf16.mxu0 0
        %1394 = vmatpush1.bf16.xpose.msra.mxu0 0
        %1395 = vmatprep.subr.bf16.mxu0 0
        %1396 = vmatpush1.bf16.xpose.msra.mxu0 0
        %1397 = vmatprep.subr.bf16.mxu0 0
        %1398 = vmatpush1.bf16.xpose.msra.mxu0 0
        %1399 = vmatprep.subr.bf16.mxu0 0
        %1400 = vmatpush1.bf16.xpose.msra.mxu0 0
        %1401 = vmatprep.subr.bf16.mxu0 0
        %1402 = vmatpush1.bf16.xpose.msra.mxu0 0
        %1403 = vmatprep.subr.bf16.mxu0 0
        %1404 = vmatpush1.bf16.xpose.msra.mxu0 0
        %1405 = vmatprep.subr.bf16.mxu0 0
        %1406 = vmatpush1.bf16.xpose.msra.mxu0 0
        %1407 = vmatprep.subr.bf16.mxu0 0
        %1408 = vmatpush1.bf16.xpose.msra.mxu0 0
        %1409 = vmatprep.subr.bf16.mxu0 0
        %1410 = vmatpush1.bf16.xpose.msra.mxu0 0
        %1411 = vmatprep.subr.bf16.mxu0 0
        %1412 = vmatpush1.bf16.xpose.msra.mxu0 0
        %1413 = vmatprep.subr.bf16.mxu0 0
        %1414 = vmatpush1.bf16.xpose.msra.mxu0 0
        %1415 = vmatprep.subr.bf16.mxu0 0
        %1416 = vmatpush1.bf16.xpose.msra.mxu0 0
        %1417 = vmatprep.subr.bf16.mxu0 0
        %1418 = vmatpush1.bf16.xpose.msra.mxu0 0
        %1419 = vmatprep.subr.bf16.mxu0 0
        %1420 = vmatpush1.bf16.xpose.msra.mxu0 0
        %1421 = vmatprep.mubr.bf16.mxu0 0
        %1422 = vmatmul.mubr.bf16.gmra.mrb[0].mxu0 %v1384
        %v1423 = vpop.f32.mrb[0].mxu0
        %v1424 = vadd.f32 0.0, %v1423
        %v1425 = vpop.f32.mrb[0].mxu0
        %v1426 = vpop.f32.mrb[0].mxu0
        %v1427 = vpop.f32.mrb[0].mxu0
        %1428 = vdwg.mxu0
        %v1429 = vsel %vm567, %v1424, -inf
        %1430 = vmax.xlane.f32.xlu0 %v1429
        %v1431 = vpop.xlane.xlu0 %1430
        %v1432 = vsub.f32 %v1424, %v1431
        %v1433 = vmul.f32 %v1432, 1.442695
        %v1434 = vpow.pop %v1433
        %v1435 = vsel %vm567, %v1434, 0.0
        %1436 = vadd.xlane.f32.xlu0 %v1435
        %v1437 = vpop.xlane.xlu0 %1436
        %v1438 = vrcp.pop %v1437
        %v1439 = vmul.f32 %v1434, %v1438
        %v1440 = vpack.c.bf16 %v1439, %v1439
        %1441 = vrot.lane.b32.xlu0 %v1090, 104
        %v1442 = vpop.permute.xlu0 %1441
        %v1444 = vsel %vm567, %v1440, 0
        %v1447 = vsel %vm629, %v1442, 0
        %1449 = vmatprep.subr.bf16.mxu0 0
        %1450 = vmatpush1.bf16.msra.mxu0 %v1447
        %1451 = vmatprep.subr.bf16.mxu0 0
        %1452 = vmatpush1.bf16.msra.mxu0 0
        %1453 = vmatprep.subr.bf16.mxu0 0
        %1454 = vmatpush1.bf16.msra.mxu0 0
        %1455 = vmatprep.subr.bf16.mxu0 0
        %1456 = vmatpush1.bf16.msra.mxu0 0
        %1457 = vmatprep.subr.bf16.mxu0 0
        %1458 = vmatpush1.bf16.msra.mxu0 0
        %1459 = vmatprep.subr.bf16.mxu0 0
        %1460 = vmatpush1.bf16.msra.mxu0 0
        %1461 = vmatprep.subr.bf16.mxu0 0
        %1462 = vmatpush1.bf16.msra.mxu0 0
        %1463 = vmatprep.subr.bf16.mxu0 0
        %1464 = vmatpush1.bf16.msra.mxu0 0
        %1465 = vmatprep.subr.bf16.mxu0 0
        %1466 = vmatpush1.bf16.msra.mxu0 0
        %1467 = vmatprep.subr.bf16.mxu0 0
        %1468 = vmatpush1.bf16.msra.mxu0 0
        %1469 = vmatprep.subr.bf16.mxu0 0
        %1470 = vmatpush1.bf16.msra.mxu0 0
        %1471 = vmatprep.subr.bf16.mxu0 0
        %1472 = vmatpush1.bf16.msra.mxu0 0
        %1473 = vmatprep.subr.bf16.mxu0 0
        %1474 = vmatpush1.bf16.msra.mxu0 0
        %1475 = vmatprep.subr.bf16.mxu0 0
        %1476 = vmatpush1.bf16.msra.mxu0 0
        %1477 = vmatprep.subr.bf16.mxu0 0
        %1478 = vmatpush1.bf16.msra.mxu0 0
        %1479 = vmatprep.subr.bf16.mxu0 0
        %1480 = vmatpush1.bf16.msra.mxu0 0
        %1481 = vmatprep.mubr.bf16.mxu0 0
        %1482 = vmatmul.mubr.bf16.gmra.mrb[0].mxu0 %v1444
        %v1483 = vpop.f32.mrb[0].mxu0
        %v1484 = vadd.f32 0.0, %v1483
        %v1485 = vpop.f32.mrb[0].mxu0
        %v1486 = vpop.f32.mrb[0].mxu0
        %v1487 = vpop.f32.mrb[0].mxu0
        %1488 = vdwg.mxu0
        %v1489 = vpack.c.bf16 %v1484, %v1484
        %v1491 = vrot.slane %v1489, 4
        %1492 = vrot.lane.b32.xlu0 %v1491, 24
        %v1493 = vpop.permute.xlu0 %1492
        %vm1495 = vcmask 261316
        %1496 = vst.msk [vmem:[#allocation3] sm:$0xf0] %vm1495, %v1493
        %v1497 = vld [vmem:[#allocation2] sm:$0xff]
        %v1498 = vld [vmem:[#allocation2 + $0x8] sm:$0xff]
        %v1499 = vld [vmem:[#allocation3] sm:$0xff]
        %v1500 = vld [vmem:[#allocation12] sm:$0xf]
        %v1501 = vld [vmem:[#allocation12 + $0x4] sm:$0xf]
        %v1502 = vld [vmem:[#allocation12 + $0x8] sm:$0xf]
        %v1503 = vld [vmem:[#allocation12 + $0xc] sm:$0xf]
        %v1508 = vunpack.c.l.b16 %v1500
        %v1509 = vunpack.c.l.b16 %v1501
        %v1510 = vunpack.c.l.b16 %v1502
        %v1511 = vunpack.c.l.b16 %v1503
        %v1512 = vpack.c.b16 %v1509, %v1508
        %v1513 = vpack.c.b16 %v1511, %v1510
        %v1517 = vsel %vm405, %v1499, 0
        %1519 = vmatprep.subr.bf16.mxu0 0
        %1520 = vmatpush1.bf16.msra.mxu0 %v1512
        %1521 = vmatprep.subr.bf16.mxu0 0
        %1522 = vmatpush1.bf16.msra.mxu0 %v1513
        %1523 = vmatprep.subr.bf16.mxu0 0
        %1524 = vmatpush1.bf16.msra.mxu0 0
        %1525 = vmatprep.subr.bf16.mxu0 0
        %1526 = vmatpush1.bf16.msra.mxu0 0
        %1527 = vmatprep.subr.bf16.mxu0 0
        %1528 = vmatpush1.bf16.msra.mxu0 0
        %1529 = vmatprep.subr.bf16.mxu0 0
        %1530 = vmatpush1.bf16.msra.mxu0 0
        %1531 = vmatprep.subr.bf16.mxu0 0
        %1532 = vmatpush1.bf16.msra.mxu0 0
        %1533 = vmatprep.subr.bf16.mxu0 0
        %1534 = vmatpush1.bf16.msra.mxu0 0
        %1535 = vmatprep.subr.bf16.mxu0 0
        %1536 = vmatpush1.bf16.msra.mxu0 0
        %1537 = vmatprep.subr.bf16.mxu0 0
        %1538 = vmatpush1.bf16.msra.mxu0 0
        %1539 = vmatprep.subr.bf16.mxu0 0
        %1540 = vmatpush1.bf16.msra.mxu0 0
        %1541 = vmatprep.subr.bf16.mxu0 0
        %1542 = vmatpush1.bf16.msra.mxu0 0
        %1543 = vmatprep.subr.bf16.mxu0 0
        %1544 = vmatpush1.bf16.msra.mxu0 0
        %1545 = vmatprep.subr.bf16.mxu0 0
        %1546 = vmatpush1.bf16.msra.mxu0 0
        %1547 = vmatprep.subr.bf16.mxu0 0
        %1548 = vmatpush1.bf16.msra.mxu0 0
        %1549 = vmatprep.subr.bf16.mxu0 0
        %1550 = vmatpush1.bf16.msra.mxu0 0
        %1551 = vmatprep.mubr.bf16.mxu0 0
        %1552 = vmatmul.mubr.bf16.gmra.mrb[0].mxu0 %v1517
        %v1553 = vpop.f32.mrb[0].mxu0
        %v1554 = vadd.f32 0.0, %v1553
        %v1555 = vpop.f32.mrb[0].mxu0
        %v1556 = vpop.f32.mrb[0].mxu0
        %v1557 = vadd.f32 0.0, %v1556
        %v1558 = vpop.f32.mrb[0].mxu0
        %1559 = vdwg.mxu0
        %v1560 = vadd.f32 %v1497, %v1554
        %v1561 = vadd.f32 %v1498, %v1557
        %1562 = vst.msk [vmem:[#allocation2] sm:$0xff] %vm405, %v1560
        %1563 = vst.msk [vmem:[#allocation2 + $0x8] sm:$0xff] %vm405, %v1561
        // Predicated region
        $region69: #{tpu_custom_call.1} parent=43 // pred_check
          %p1564 = pneg %p375
        $region70: #{tpu_custom_call.1} parent=43 // pred_check_branch
          %1566 = sbr.rel (%p1564) target = $region72
        $region71: #{tpu_custom_call.1} parent=43 // pred_region
          %v1567 = vld [vmem:[#allocation2] sm:$0xff]
          %v1568 = vld [vmem:[#allocation2 + $0x8] sm:$0xff]
          %v1569 = vld [vmem:[%s5] sm:$0x1]
          %v1571 = vlaneseq
          %v1572 = vshrl.u32 %v1571, 7
          %v1573 = vsub.s32 0, %v1572
          %v1574 = vrot.slane %v1569, %v1573
          %v1576 = vadd.f32 %v1567, %v1574
          %v1577 = vadd.f32 %v1568, %v1574
          %1578 = vst.msk [vmem:[%s371] sm:$0xff] %vm405, %v1576
          %1579 = vst.msk [vmem:[%s371 + $0x8] sm:$0xff] %vm405, %v1577
        $region72: #{tpu_custom_call.1} parent=43 // pred_fallthru
          _
        %s1580 = sand.u32 %s196, 1
        %s1581 = scalar_lea.sflag [#allocation6], %s1580
        %s1582 = sand.u32 %s196, 1
        %s1583 = smul.addr %s1582, 16
        %s1584 = scalar_lea.vmem [#allocation13], %s1583
        // Predicated region
        $region73: #{tpu_custom_call.1} parent=43 // pred_check
          %p1585 = pneg %p206
        $region74: #{tpu_custom_call.1} parent=43 // pred_check_branch
          %1587 = sbr.rel (%p1585) target = $region76
        $region75: #{tpu_custom_call.1} parent=43 // pred_region
          %s1588 = smul.u32 2, %s29
          %s1590 = ssub.s32 256, 256
          %1591 = vsyncadd %s1581, %s1590
          %s1592 = smul.addr %s1588, 128
          %s1593 = scalar_lea.hbm %s6, %s1592
          %s1594 = sshll.u32 %s1584, 4
          %s1595 = int_to_ptr.vmem [resolvable:$true] %s1594
          %1600 = dma.vmem_to_hbm [thread:$0]  %s1595, 256, %s1593, %s1581, 128, 128, 8
        $region76: #{tpu_custom_call.1} parent=43 // pred_fallthru
          _
      $region44: #{tpu_custom_call.1} parent=5 // pred_fallthru
        _
      %p1601 = scmp.le.s32.totalorder 2, %s20
      // Predicated region
      $region77: #{tpu_custom_call.1} parent=5 // pred_check
        %p1602 = pneg %p1601
      $region78: #{tpu_custom_call.1} parent=5 // pred_check_branch
        %1604 = sbr.rel (%p1602) target = $region80
      $region79: #{tpu_custom_call.1} parent=5 // pred_region
        %s1605 = ssub.s32 %s20, 2
        // Predicated region
        $region81: #{tpu_custom_call.1} parent=79 // pred_check
          %p1606 = pneg %p212
        $region82: #{tpu_custom_call.1} parent=79 // pred_check_branch
          %1608 = sbr.rel (%p1606) target = $region84
        $region83: #{tpu_custom_call.1} parent=79 // pred_region
          %s1609 = sand.u32 %s197, 1
          %s1610 = scalar_lea.sflag [#allocation6], %s1609
          %s1611 = sand.u32 %s197, 1
          %s1612 = smul.addr %s1611, 16
          %s1613 = scalar_lea.vmem [#allocation13], %s1612
          %1614 = dma.done %s1610, 256
        $region84: #{tpu_custom_call.1} parent=79 // pred_fallthru
          _
      $region80: #{tpu_custom_call.1} parent=5 // pred_fallthru
        _
    $region6: #{tpu_custom_call.1} parent=1 // loop_footer
      %s24 = sadd.s32 1, %s20
    $region7: #{tpu_custom_call.1} parent=1 // loop_footer_branch
      %19 = sbr.rel target = $region3
    $region8: #{tpu_custom_call.1} parent=1 // loop_exit
      _
    %1615 = vsyncpa [#allocation5], 1
    %s1616 = scalar_lea.sflag [#allocation5], 1
    %1617 = vsyncpa %s1616, 1
    %1618 = vsyncpa [#allocation8], 1
    %1619 = vsyncpa [#allocation11], 1
    %1620 = vsyncpa [#allocation6], 1
    %s1621 = scalar_lea.sflag [#allocation6], 1
    %1622 = vsyncpa %s1621, 1

</llo_original>
